<compile_context>
chip_gen: v7x
topology: tpu7x:2x2x1
jax: 0.10.0
libtpu: 0.0.40
codegen_flags: <defaults>
</compile_context>

<pallas_src>
import functools

import jax
import jax.numpy as jnp
from jax.experimental import pallas as pl
from jax.experimental.pallas import tpu as pltpu


def _supports_bf16_eup():
    # bf16 exp only on v6e / v7x (v5e and older have no bf16 EUP/VPU).
    try:
        kind = jax.devices()[0].device_kind.lower()
    except Exception:
        return False
    return any(tag in kind for tag in ("v6", "v7", "tpu7"))


def _fused_gat_kernel(x_ref, w1_ref, v1s_ref, b1_ref,
                      w2_ref, v2s_ref, b2_ref, mask_ref,
                      out_ref,
                      hsrc, ssrc, sdst, h1,
                      *, tile, proj_w, negative_slope, exp_dtype, mask_resident):
    phase = pl.program_id(0)          # 0: layer-1 -> h1 scratch, 1: layer-2 -> out
    t = pl.program_id(1)              # destination-row tile
    row0 = pl.multiple_of(t * tile, tile)

    def project(x_bf16, w_ref, vs_ref):
        # One MXU matmul against [W_src | 0 | v_dst]: columns 0..Fo-1 are h_src and the
        # LAST column is the per-node destination score s_dst (rides the same matmul).
        h = jnp.dot(x_bf16, w_ref[...], preferred_element_type=jnp.float32)  # [N, proj_w]
        hsrc[...] = h.astype(jnp.bfloat16)                     # MXU RHS for aggregation
        sdst[...] = h[:, proj_w - 1:proj_w]                    # [N, 1] f32 score column
        # s_src as a lane-dense [1, N] row: single M=1 matvec against the layer input.
        ssrc[...] = jnp.einsum('of,nf->on', vs_ref[...], x_bf16,
                               preferred_element_type=jnp.float32)

    def attend(b_ref):
        if mask_resident:
            mask_tile = mask_ref[pl.ds(row0, tile), :]         # resident (n, n) bf16 mask
        else:
            mask_tile = mask_ref[...]                          # streamed (tile, n) rows
        s_dst_t = sdst[pl.ds(row0, tile), :]                   # [tile, 1]
        logits = s_dst_t + ssrc[...]                           # [tile, N] broadcast add
        logits = jnp.maximum(logits, negative_slope * logits)  # LeakyReLU(0.2)
        masked = logits + mask_tile.astype(jnp.float32)        # -1e30 on non-edges
        # Floor the row max so rows with no in-edges give exp(~-1e30) = 0 -> out = bias.
        m = jnp.maximum(jnp.max(masked, axis=-1, keepdims=True), -1e20)
        p = jnp.exp((masked - m).astype(exp_dtype))            # EUP; bf16 on v6e/v7x
        denom = jnp.sum(p, axis=-1, keepdims=True, dtype=jnp.float32)
        inv = pl.reciprocal(jnp.maximum(denom, 1e-16), approx=True)
        agg = jnp.dot(p.astype(jnp.bfloat16), hsrc[...],
                      preferred_element_type=jnp.float32)      # [tile, proj_w]
        return agg * inv + b_ref[...]                          # fold 1/denom here

    # ------------------------- layer 1 (phase 0) -------------------------
    @pl.when((phase == 0) & (t == 0))
    def _():
        project(x_ref[...], w1_ref, v1s_ref)

    @pl.when(phase == 0)
    def _():
        h1[pl.ds(row0, tile), :] = jnp.maximum(
            attend(b1_ref), 0.0).astype(jnp.bfloat16)          # conv1 + ReLU, bf16 scratch

    # ------------------------- layer 2 (phase 1) -------------------------
    @pl.when((phase == 1) & (t == 0))
    def _():
        project(h1[...], w2_ref, v2s_ref)

    @pl.when(phase == 1)
    def _():
        out_ref[...] = attend(b2_ref).astype(out_ref.dtype)


@functools.partial(jax.jit, static_argnames=("tile",))
def gat_conv_forward(x, adj, params, *, tile=128):
    n, f_in = x.shape
    hidden = params["w1_src"].shape[1]
    out_ch = params["w2_src"].shape[1]
    assert n % tile == 0 and tile % 8 == 0

    # Lane-aligned projection width; the LAST column carries the folded s_dst score.
    proj_w = pl.cdiv(max(hidden, out_ch) + 1, 128) * 128

    f32, bf16 = jnp.float32, jnp.bfloat16

    # Fold attention vectors into the projection weights:
    #   v_dst = W_dst @ a_dst^T  -> last column of the packed weight (eliminates W_dst/h_dst)
    #   v_src = W_src @ a_src^T  -> kept as a [1, Fin] row for the lane-dense s_src matvec
    v1_dst = params["w1_dst"] @ params["a1_dst"].T               # [f_in, 1]
    v2_dst = params["w2_dst"] @ params["a2_dst"].T               # [hidden, 1]
    v1_src = (params["w1_src"] @ params["a1_src"].T).T           # [1, f_in]
    v2_src = (params["w2_src"] @ params["a2_src"].T).T           # [1, hidden]

    w1cat = jnp.zeros((f_in, proj_w), f32)
    w1cat = w1cat.at[:, :hidden].set(params["w1_src"]).at[:, proj_w - 1:].set(v1_dst)
    # Rows >= hidden of w2cat stay zero so h1's padding/score columns are killed.
    w2cat = jnp.zeros((proj_w, proj_w), f32)
    w2cat = w2cat.at[:hidden, :out_ch].set(params["w2_src"]).at[:hidden, proj_w - 1:].set(v2_dst)
    v2_src_p = jnp.zeros((1, proj_w), f32).at[:, :hidden].set(v2_src)

    b1p = jnp.zeros((1, proj_w), f32).at[:, :hidden].set(params["b1"])
    b2p = jnp.zeros((1, proj_w), f32).at[:, :out_ch].set(params["b2"])

    # bf16 MXU operands and bf16 mask bias in HBM; accumulation / softmax math stays f32.
    x_bf = x.astype(bf16)
    w1cat = w1cat.astype(bf16)
    w2cat = w2cat.astype(bf16)
    v1_src = v1_src.astype(bf16)
    v2_src_p = v2_src_p.astype(bf16)
    mask_bias = jnp.where(adj > 0, 0.0, -1e30).astype(bf16)

    num_tiles = n // tile
    exp_dtype = bf16 if _supports_bf16_eup() else f32

    # Resident full mask (DMA'd once for both layers) when it comfortably fits VMEM,
    # otherwise stream (tile, n) rows per dst tile.
    mask_resident = (2 * n * n * 2) <= (16 * 1024 * 1024)
    if mask_resident:
        mask_spec = pl.BlockSpec((n, n), lambda p, t: (0, 0))
        mask_block_bytes = n * n * 2
    else:
        mask_spec = pl.BlockSpec((tile, n), lambda p, t: (t, 0))
        mask_block_bytes = tile * n * 2

    kern = functools.partial(_fused_gat_kernel, tile=tile, proj_w=proj_w,
                             negative_slope=0.2, exp_dtype=exp_dtype,
                             mask_resident=mask_resident)

    # VMEM budget: double-buffered blocks + persistent scratch, with margin; capped at
    # 48 MiB so v7x (64 MiB physical VMEM) keeps headroom.
    in_block_bytes = (n * f_in * 2 + f_in * proj_w * 2 + f_in * 2 + proj_w * 4
                      + proj_w * proj_w * 2 + proj_w * 2 + proj_w * 4 + mask_block_bytes)
    out_block_bytes = tile * proj_w * 4
    scratch_bytes = 2 * n * proj_w * 2 + 8 * n * 4 + n * 128 * 4
    est = 2 * (in_block_bytes + out_block_bytes) + scratch_bytes + (2 << 20)
    vmem_limit = int(min(max(2 * est, 16 << 20), 48 << 20))

    flops = int(2 * n * f_in * proj_w + 2 * n * proj_w * proj_w
                + 2 * n * (f_in + proj_w) + 2 * 2 * n * n * proj_w + 12 * n * n)
    cost = pl.CostEstimate(
        flops=flops,
        transcendentals=int(2 * n * n),
        bytes_accessed=int(n * f_in * 2 + f_in * proj_w * 2 + proj_w * proj_w * 2
                           + (1 if mask_resident else 2) * n * n * 2 + n * proj_w * 4))

    grid_spec = pltpu.PrefetchScalarGridSpec(
        num_scalar_prefetch=0,
        grid=(2, num_tiles),                                   # (phase, dst tile)
        in_specs=[
            pl.BlockSpec((n, f_in), lambda p, t: (0, 0)),           # x (bf16, resident)
            pl.BlockSpec((f_in, proj_w), lambda p, t: (0, 0)),      # [W1_src | 0 | v1_dst]
            pl.BlockSpec((1, f_in), lambda p, t: (0, 0)),           # v1_src row
            pl.BlockSpec((1, proj_w), lambda p, t: (0, 0)),         # b1 (padded, f32)
            pl.BlockSpec((proj_w, proj_w), lambda p, t: (0, 0)),    # [W2_src | 0 | v2_dst]
            pl.BlockSpec((1, proj_w), lambda p, t: (0, 0)),         # v2_src row (padded)
            pl.BlockSpec((1, proj_w), lambda p, t: (0, 0)),         # b2 (padded, f32)
            mask_spec,                                              # bf16 mask bias
        ],
        # phase 0 maps every step to output block 0 (never written, never flushed);
        # phase 1 writes each block exactly once before it is written back.
        out_specs=pl.BlockSpec((tile, proj_w), lambda p, t: (p * t, 0)),
        scratch_shapes=[
            pltpu.VMEM((n, proj_w), jnp.bfloat16),   # h_src (+ score col) of current layer
            pltpu.VMEM((1, n), jnp.float32),         # s_src row (lane-dense)
            pltpu.VMEM((n, 1), jnp.float32),         # s_dst column
            pltpu.VMEM((n, proj_w), jnp.bfloat16),   # h1 (ReLU'd layer-1 output, padded)
        ],
    )

    out_padded = pl.pallas_call(
        kern,
        out_shape=jax.ShapeDtypeStruct((n, proj_w), jnp.float32),
        grid_spec=grid_spec,
        compiler_params=pltpu.CompilerParams(
            dimension_semantics=("arbitrary", "arbitrary"),
            vmem_limit_bytes=vmem_limit),
        cost_estimate=cost,
    )(x_bf, w1cat, v1_src, b1p, w2cat, v2_src_p, b2p, mask_bias)

    return out_padded[:, :out_ch]


def init_params(key, hidden_channels, out_channels):
    def glorot(k, shape):
        fan_in, fan_out = shape[0], shape[-1]
        limit = jnp.sqrt(6.0 / (fan_in + fan_out))
        return jax.random.uniform(k, shape, jnp.float32, -limit, limit)

    ks = jax.random.split(key, 8)
    return {
        "w1_src": glorot(ks[0], (hidden_channels, hidden_channels)),
        "w1_dst": glorot(ks[1], (hidden_channels, hidden_channels)),
        "a1_src": glorot(ks[2], (1, hidden_channels)),
        "a1_dst": glorot(ks[3], (1, hidden_channels)),
        "b1": jnp.zeros((1, hidden_channels), jnp.float32),
        "w2_src": glorot(ks[4], (hidden_channels, out_channels)),
        "w2_dst": glorot(ks[5], (hidden_channels, out_channels)),
        "a2_src": glorot(ks[6], (1, out_channels)),
        "a2_dst": glorot(ks[7], (1, out_channels)),
        "b2": jnp.zeros((1, out_channels), jnp.float32),
    }


def _gat_layer_ref(x, w_src, w_dst, a_src, a_dst, adj, bias):
    h_src = x @ w_src
    h_dst = x @ w_dst
    logits = (h_dst @ a_dst.T) + (h_src @ a_src.T).T
    logits = jnp.where(logits > 0, logits, 0.2 * logits)
    edge = adj > 0
    masked = jnp.where(edge, logits, -1e30)
    m = jnp.max(masked, axis=-1, keepdims=True)
    p = jnp.where(edge, jnp.exp(masked - m), 0.0)
    alpha = p / jnp.maximum(jnp.sum(p, axis=-1, keepdims=True), 1e-16)
    return alpha @ h_src + bias


def gat_conv_ref(x, adj, params):
    h = jax.nn.relu(_gat_layer_ref(x, params["w1_src"], params["w1_dst"],
                                   params["a1_src"], params["a1_dst"],
                                   adj, params["b1"]))
    return _gat_layer_ref(h, params["w2_src"], params["w2_dst"],
                          params["a2_src"], params["a2_dst"], adj, params["b2"])


if __name__ == "__main__":
    key = jax.random.PRNGKey(0)
    N = 256                 # 2 dst tiles of 128 -> exercises the grid
    hidden_channels = 32
    out_channels = 8

    k_x, k_p = jax.random.split(key)
    x = jax.random.normal(k_x, (N, hidden_channels), jnp.float32)

    # deterministic small graph: ring edges i -> (i+1)%N and (i+2)%N -> i
    src = jnp.concatenate([jnp.arange(N), (jnp.arange(N) + 2) % N])
    dst = jnp.concatenate([(jnp.arange(N) + 1) % N, jnp.arange(N)])
    edge_index = jnp.stack([src, dst])                          # [2, E], E = 512
    # dense adjacency mask: adj[dst, src] = 1  (edge src -> dst)
    adj = jnp.zeros((N, N), jnp.float32).at[edge_index[1], edge_index[0]].set(1.0)

    params = init_params(k_p, hidden_channels, out_channels)

    out = gat_conv_forward(x, adj, params, tile=128)
    out = jax.block_until_ready(out)

    assert out.shape == (N, out_channels)
    assert bool(jnp.all(jnp.isfinite(out)))

    ref = gat_conv_ref(x, adj, params)
    max_err = float(jnp.max(jnp.abs(out - ref)))
    assert max_err < 2e-1, f"mismatch vs f32 reference: {max_err}"
    print("KERNEL_OK")
</pallas_src>

<mosaic_0001>
module attributes {stable_mosaic.version = 11 : i64} {
  func.func @_fused_gat_kernel(%arg0: i32, %arg1: i32, %arg2: memref<256x32xbf16, #tpu.memory_space<vmem>>, %arg3: memref<32x128xbf16, #tpu.memory_space<vmem>>, %arg4: memref<1x32xbf16, #tpu.memory_space<vmem>>, %arg5: memref<1x128xf32, #tpu.memory_space<vmem>>, %arg6: memref<128x128xbf16, #tpu.memory_space<vmem>>, %arg7: memref<1x128xbf16, #tpu.memory_space<vmem>>, %arg8: memref<1x128xf32, #tpu.memory_space<vmem>>, %arg9: memref<256x256xbf16, #tpu.memory_space<vmem>>, %arg10: memref<128x128xf32, #tpu.memory_space<vmem>>, %arg11: memref<256x128xbf16, #tpu.memory_space<vmem>>, %arg12: memref<1x256xf32, #tpu.memory_space<vmem>>, %arg13: memref<256x1xf32, #tpu.memory_space<vmem>>, %arg14: memref<256x128xbf16, #tpu.memory_space<vmem>>) attributes {dimension_semantics = [#tpu.dimension_semantics<arbitrary>, #tpu.dimension_semantics<arbitrary>], iteration_bounds = array<i64: 2, 2>, scalar_prefetch = 0 : i64, scratch_operands = 4 : i64, tpu.core_type = #tpu.core_type<tc>, window_params = [{pipeline_mode = #tpu.pipeline_mode<synchronous>, transform_indices = @transform_0, window_bounds = array<i64: 256, 32>}, {pipeline_mode = #tpu.pipeline_mode<synchronous>, transform_indices = @transform_1, window_bounds = array<i64: 32, 128>}, {pipeline_mode = #tpu.pipeline_mode<synchronous>, transform_indices = @transform_2, window_bounds = array<i64: 1, 32>}, {pipeline_mode = #tpu.pipeline_mode<synchronous>, transform_indices = @transform_3, window_bounds = array<i64: 1, 128>}, {pipeline_mode = #tpu.pipeline_mode<synchronous>, transform_indices = @transform_4, window_bounds = array<i64: 128, 128>}, {pipeline_mode = #tpu.pipeline_mode<synchronous>, transform_indices = @transform_5, window_bounds = array<i64: 1, 128>}, {pipeline_mode = #tpu.pipeline_mode<synchronous>, transform_indices = @transform_6, window_bounds = array<i64: 1, 128>}, {pipeline_mode = #tpu.pipeline_mode<synchronous>, transform_indices = @transform_7, window_bounds = array<i64: 256, 256>}, {transform_indices = @transform_8, window_bounds = array<i64: 128, 128>}]} {
    %c128_i32 = arith.constant 128 : i32
    %0 = arith.muli %arg1, %c128_i32 : i32
    %1 = tpu.assume_multiple %0, 128 : i32
    %c0_i32 = arith.constant 0 : i32
    %2 = arith.cmpi eq, %arg0, %c0_i32 : i32
    %c0_i32_0 = arith.constant 0 : i32
    %3 = arith.cmpi eq, %arg1, %c0_i32_0 : i32
    %4 = arith.andi %2, %3 : i1
    %5 = arith.extui %4 : i1 to i32
    %c0_i32_1 = arith.constant 0 : i32
    %6 = arith.cmpi ne, %5, %c0_i32_1 : i32
    scf.if %6 {
      %c0 = arith.constant 0 : index
      %c0_8 = arith.constant 0 : index
      %18 = vector.load %arg2[%c0, %c0_8] : memref<256x32xbf16, #tpu.memory_space<vmem>>, vector<256x32xbf16>
      %c0_9 = arith.constant 0 : index
      %c0_10 = arith.constant 0 : index
      %19 = vector.load %arg3[%c0_9, %c0_10] : memref<32x128xbf16, #tpu.memory_space<vmem>>, vector<32x128xbf16>
      %cst = arith.constant dense<0.000000e+00> : vector<256x128xf32>
      %20 = tpu.matmul %18, %19, %cst {dimension_numbers = #tpu.dot_dimension_numbers<[1], [0], [0], [1], [0, 0, 1, 1], [], []>} : vector<256x32xbf16>, vector<32x128xbf16>, vector<256x128xf32> -> vector<256x128xf32>
      %21 = arith.truncf %20 : vector<256x128xf32> to vector<256x128xbf16>
      %c0_11 = arith.constant 0 : index
      %c0_12 = arith.constant 0 : index
      %22 = vector.load %arg11[%c0_11, %c0_12] : memref<256x128xbf16, #tpu.memory_space<vmem>>, vector<256x128xbf16>
      tpu.vector_store %arg11[%c0_11, %c0_12], %21 {strides = array<i32>} : memref<256x128xbf16, #tpu.memory_space<vmem>>, vector<256x128xbf16>,
      %23 = vector.extract_strided_slice %20 {offsets = [0, 127], sizes = [256, 1], strides = [1, 1]} : vector<256x128xf32> to vector<256x1xf32>
      %c0_13 = arith.constant 0 : index
      %c0_14 = arith.constant 0 : index
      %24 = vector.load %arg13[%c0_13, %c0_14] : memref<256x1xf32, #tpu.memory_space<vmem>>, vector<256x1xf32>
      tpu.vector_store %arg13[%c0_13, %c0_14], %23 {strides = array<i32>} : memref<256x1xf32, #tpu.memory_space<vmem>>, vector<256x1xf32>,
      %c0_15 = arith.constant 0 : index
      %c0_16 = arith.constant 0 : index
      %25 = vector.load %arg4[%c0_15, %c0_16] : memref<1x32xbf16, #tpu.memory_space<vmem>>, vector<1x32xbf16>
      "tpu.trace_start"() <{level = 10 : i32, message = "of,nf->on"}> : () -> ()
      %cst_17 = arith.constant dense<0.000000e+00> : vector<1x256xf32>
      %26 = tpu.matmul %25, %18, %cst_17 {dimension_numbers = #tpu.dot_dimension_numbers<[1], [1], [0], [0], [0, 0, 1, 0], [], []>} : vector<1x32xbf16>, vector<256x32xbf16>, vector<1x256xf32> -> vector<1x256xf32>
      "tpu.trace_stop"() : () -> ()
      %c0_18 = arith.constant 0 : index
      %c0_19 = arith.constant 0 : index
      %27 = vector.load %arg12[%c0_18, %c0_19] : memref<1x256xf32, #tpu.memory_space<vmem>>, vector<1x256xf32>
      tpu.vector_store %arg12[%c0_18, %c0_19], %26 {strides = array<i32>} : memref<1x256xf32, #tpu.memory_space<vmem>>, vector<1x256xf32>,
    } else {
    }
    %c0_i32_2 = arith.constant 0 : i32
    %7 = arith.cmpi eq, %arg0, %c0_i32_2 : i32
    %8 = arith.extui %7 : i1 to i32
    %c0_i32_3 = arith.constant 0 : i32
    %9 = arith.cmpi ne, %8, %c0_i32_3 : i32
    scf.if %9 {
      %18 = arith.index_cast %1 : i32 to index
      %c0 = arith.constant 0 : index
      %19 = vector.load %arg9[%18, %c0] : memref<256x256xbf16, #tpu.memory_space<vmem>>, vector<128x256xbf16>
      %20 = arith.index_cast %1 : i32 to index
      %c0_8 = arith.constant 0 : index
      %21 = vector.load %arg13[%20, %c0_8] : memref<256x1xf32, #tpu.memory_space<vmem>>, vector<128x1xf32>
      %c0_9 = arith.constant 0 : index
      %c0_10 = arith.constant 0 : index
      %22 = vector.load %arg12[%c0_9, %c0_10] : memref<1x256xf32, #tpu.memory_space<vmem>>, vector<1x256xf32>
      %23 = vector.broadcast %21 : vector<128x1xf32> to vector<128x256xf32>
      %24 = vector.broadcast %22 : vector<1x256xf32> to vector<128x256xf32>
      %25 = arith.addf %23, %24 : vector<128x256xf32>
      %cst = arith.constant 2.000000e-01 : f32
      %26 = vector.broadcast %cst : f32 to vector<128x256xf32>
      %27 = arith.mulf %26, %25 : vector<128x256xf32>
      %28 = arith.maximumf %25, %27 : vector<128x256xf32>
      %29 = arith.extf %19 : vector<128x256xbf16> to vector<128x256xf32>
      %30 = arith.addf %28, %29 : vector<128x256xf32>
      %cst_11 = arith.constant dense<0xFF800000> : vector<128xf32>
      %31 = vector.multi_reduction <maximumf>, %30, %cst_11 [1] : vector<128x256xf32> to vector<128xf32>
      %32 = vector.shape_cast %31 : vector<128xf32> to vector<128x1xf32>
      %cst_12 = arith.constant -1.000000e+20 : f32
      %33 = vector.broadcast %cst_12 : f32 to vector<128x1xf32>
      %34 = arith.maximumf %32, %33 : vector<128x1xf32>
      %35 = vector.broadcast %34 : vector<128x1xf32> to vector<128x256xf32>
      %36 = arith.subf %30, %35 : vector<128x256xf32>
      %37 = math.exp %36 : vector<128x256xf32>
      %cst_13 = arith.constant dense<0.000000e+00> : vector<128xf32>
      %38 = vector.multi_reduction <add>, %37, %cst_13 [1] : vector<128x256xf32> to vector<128xf32>
      %39 = vector.shape_cast %38 : vector<128xf32> to vector<128x1xf32>
      %cst_14 = arith.constant 1.000000e-16 : f32
      %40 = vector.broadcast %cst_14 : f32 to vector<128x1xf32>
      %41 = arith.maximumf %39, %40 : vector<128x1xf32>
      %42 = tpu.reciprocal %41 {approx = true} : vector<128x1xf32> -> vector<128x1xf32>
      %43 = arith.truncf %37 : vector<128x256xf32> to vector<128x256xbf16>
      %c0_15 = arith.constant 0 : index
      %c0_16 = arith.constant 0 : index
      %44 = vector.load %arg11[%c0_15, %c0_16] : memref<256x128xbf16, #tpu.memory_space<vmem>>, vector<256x128xbf16>
      %cst_17 = arith.constant dense<0.000000e+00> : vector<128x128xf32>
      %45 = tpu.matmul %43, %44, %cst_17 {dimension_numbers = #tpu.dot_dimension_numbers<[1], [0], [0], [1], [0, 0, 1, 1], [], []>} : vector<128x256xbf16>, vector<256x128xbf16>, vector<128x128xf32> -> vector<128x128xf32>
      %46 = vector.broadcast %42 : vector<128x1xf32> to vector<128x128xf32>
      %47 = arith.mulf %45, %46 : vector<128x128xf32>
      %c0_18 = arith.constant 0 : index
      %c0_19 = arith.constant 0 : index
      %48 = vector.load %arg5[%c0_18, %c0_19] : memref<1x128xf32, #tpu.memory_space<vmem>>, vector<1x128xf32>
      %49 = vector.broadcast %48 : vector<1x128xf32> to vector<128x128xf32>
      %50 = arith.addf %47, %49 : vector<128x128xf32>
      %cst_20 = arith.constant 0.000000e+00 : f32
      %51 = vector.broadcast %cst_20 : f32 to vector<128x128xf32>
      %52 = arith.maximumf %50, %51 : vector<128x128xf32>
      %53 = arith.truncf %52 : vector<128x128xf32> to vector<128x128xbf16>
      %54 = arith.index_cast %1 : i32 to index
      %c0_21 = arith.constant 0 : index
      %55 = vector.load %arg14[%54, %c0_21] : memref<256x128xbf16, #tpu.memory_space<vmem>>, vector<128x128xbf16>
      tpu.vector_store %arg14[%54, %c0_21], %53 {strides = array<i32>} : memref<256x128xbf16, #tpu.memory_space<vmem>>, vector<128x128xbf16>,
    } else {
    }
    %c1_i32 = arith.constant 1 : i32
    %10 = arith.cmpi eq, %arg0, %c1_i32 : i32
    %c0_i32_4 = arith.constant 0 : i32
    %11 = arith.cmpi eq, %arg1, %c0_i32_4 : i32
    %12 = arith.andi %10, %11 : i1
    %13 = arith.extui %12 : i1 to i32
    %c0_i32_5 = arith.constant 0 : i32
    %14 = arith.cmpi ne, %13, %c0_i32_5 : i32
    scf.if %14 {
      %c0 = arith.constant 0 : index
      %c0_8 = arith.constant 0 : index
      %18 = vector.load %arg14[%c0, %c0_8] : memref<256x128xbf16, #tpu.memory_space<vmem>>, vector<256x128xbf16>
      %c0_9 = arith.constant 0 : index
      %c0_10 = arith.constant 0 : index
      %19 = vector.load %arg6[%c0_9, %c0_10] : memref<128x128xbf16, #tpu.memory_space<vmem>>, vector<128x128xbf16>
      %cst = arith.constant dense<0.000000e+00> : vector<256x128xf32>
      %20 = tpu.matmul %18, %19, %cst {dimension_numbers = #tpu.dot_dimension_numbers<[1], [0], [0], [1], [0, 0, 1, 1], [], []>} : vector<256x128xbf16>, vector<128x128xbf16>, vector<256x128xf32> -> vector<256x128xf32>
      %21 = arith.truncf %20 : vector<256x128xf32> to vector<256x128xbf16>
      %c0_11 = arith.constant 0 : index
      %c0_12 = arith.constant 0 : index
      %22 = vector.load %arg11[%c0_11, %c0_12] : memref<256x128xbf16, #tpu.memory_space<vmem>>, vector<256x128xbf16>
      tpu.vector_store %arg11[%c0_11, %c0_12], %21 {strides = array<i32>} : memref<256x128xbf16, #tpu.memory_space<vmem>>, vector<256x128xbf16>,
      %23 = vector.extract_strided_slice %20 {offsets = [0, 127], sizes = [256, 1], strides = [1, 1]} : vector<256x128xf32> to vector<256x1xf32>
      %c0_13 = arith.constant 0 : index
      %c0_14 = arith.constant 0 : index
      %24 = vector.load %arg13[%c0_13, %c0_14] : memref<256x1xf32, #tpu.memory_space<vmem>>, vector<256x1xf32>
      tpu.vector_store %arg13[%c0_13, %c0_14], %23 {strides = array<i32>} : memref<256x1xf32, #tpu.memory_space<vmem>>, vector<256x1xf32>,
      %c0_15 = arith.constant 0 : index
      %c0_16 = arith.constant 0 : index
      %25 = vector.load %arg7[%c0_15, %c0_16] : memref<1x128xbf16, #tpu.memory_space<vmem>>, vector<1x128xbf16>
      "tpu.trace_start"() <{level = 10 : i32, message = "of,nf->on"}> : () -> ()
      %cst_17 = arith.constant dense<0.000000e+00> : vector<1x256xf32>
      %26 = tpu.matmul %25, %18, %cst_17 {dimension_numbers = #tpu.dot_dimension_numbers<[1], [1], [0], [0], [0, 0, 1, 0], [], []>} : vector<1x128xbf16>, vector<256x128xbf16>, vector<1x256xf32> -> vector<1x256xf32>
      "tpu.trace_stop"() : () -> ()
      %c0_18 = arith.constant 0 : index
      %c0_19 = arith.constant 0 : index
      %27 = vector.load %arg12[%c0_18, %c0_19] : memref<1x256xf32, #tpu.memory_space<vmem>>, vector<1x256xf32>
      tpu.vector_store %arg12[%c0_18, %c0_19], %26 {strides = array<i32>} : memref<1x256xf32, #tpu.memory_space<vmem>>, vector<1x256xf32>,
    } else {
    }
    %c1_i32_6 = arith.constant 1 : i32
    %15 = arith.cmpi eq, %arg0, %c1_i32_6 : i32
    %16 = arith.extui %15 : i1 to i32
    %c0_i32_7 = arith.constant 0 : i32
    %17 = arith.cmpi ne, %16, %c0_i32_7 : i32
    scf.if %17 {
      %18 = arith.index_cast %1 : i32 to index
      %c0 = arith.constant 0 : index
      %19 = vector.load %arg9[%18, %c0] : memref<256x256xbf16, #tpu.memory_space<vmem>>, vector<128x256xbf16>
      %20 = arith.index_cast %1 : i32 to index
      %c0_8 = arith.constant 0 : index
      %21 = vector.load %arg13[%20, %c0_8] : memref<256x1xf32, #tpu.memory_space<vmem>>, vector<128x1xf32>
      %c0_9 = arith.constant 0 : index
      %c0_10 = arith.constant 0 : index
      %22 = vector.load %arg12[%c0_9, %c0_10] : memref<1x256xf32, #tpu.memory_space<vmem>>, vector<1x256xf32>
      %23 = vector.broadcast %21 : vector<128x1xf32> to vector<128x256xf32>
      %24 = vector.broadcast %22 : vector<1x256xf32> to vector<128x256xf32>
      %25 = arith.addf %23, %24 : vector<128x256xf32>
      %cst = arith.constant 2.000000e-01 : f32
      %26 = vector.broadcast %cst : f32 to vector<128x256xf32>
      %27 = arith.mulf %26, %25 : vector<128x256xf32>
      %28 = arith.maximumf %25, %27 : vector<128x256xf32>
      %29 = arith.extf %19 : vector<128x256xbf16> to vector<128x256xf32>
      %30 = arith.addf %28, %29 : vector<128x256xf32>
      %cst_11 = arith.constant dense<0xFF800000> : vector<128xf32>
      %31 = vector.multi_reduction <maximumf>, %30, %cst_11 [1] : vector<128x256xf32> to vector<128xf32>
      %32 = vector.shape_cast %31 : vector<128xf32> to vector<128x1xf32>
      %cst_12 = arith.constant -1.000000e+20 : f32
      %33 = vector.broadcast %cst_12 : f32 to vector<128x1xf32>
      %34 = arith.maximumf %32, %33 : vector<128x1xf32>
      %35 = vector.broadcast %34 : vector<128x1xf32> to vector<128x256xf32>
      %36 = arith.subf %30, %35 : vector<128x256xf32>
      %37 = math.exp %36 : vector<128x256xf32>
      %cst_13 = arith.constant dense<0.000000e+00> : vector<128xf32>
      %38 = vector.multi_reduction <add>, %37, %cst_13 [1] : vector<128x256xf32> to vector<128xf32>
      %39 = vector.shape_cast %38 : vector<128xf32> to vector<128x1xf32>
      %cst_14 = arith.constant 1.000000e-16 : f32
      %40 = vector.broadcast %cst_14 : f32 to vector<128x1xf32>
      %41 = arith.maximumf %39, %40 : vector<128x1xf32>
      %42 = tpu.reciprocal %41 {approx = true} : vector<128x1xf32> -> vector<128x1xf32>
      %43 = arith.truncf %37 : vector<128x256xf32> to vector<128x256xbf16>
      %c0_15 = arith.constant 0 : index
      %c0_16 = arith.constant 0 : index
      %44 = vector.load %arg11[%c0_15, %c0_16] : memref<256x128xbf16, #tpu.memory_space<vmem>>, vector<256x128xbf16>
      %cst_17 = arith.constant dense<0.000000e+00> : vector<128x128xf32>
      %45 = tpu.matmul %43, %44, %cst_17 {dimension_numbers = #tpu.dot_dimension_numbers<[1], [0], [0], [1], [0, 0, 1, 1], [], []>} : vector<128x256xbf16>, vector<256x128xbf16>, vector<128x128xf32> -> vector<128x128xf32>
      %46 = vector.broadcast %42 : vector<128x1xf32> to vector<128x128xf32>
      %47 = arith.mulf %45, %46 : vector<128x128xf32>
      %c0_18 = arith.constant 0 : index
      %c0_19 = arith.constant 0 : index
      %48 = vector.load %arg8[%c0_18, %c0_19] : memref<1x128xf32, #tpu.memory_space<vmem>>, vector<1x128xf32>
      %49 = vector.broadcast %48 : vector<1x128xf32> to vector<128x128xf32>
      %50 = arith.addf %47, %49 : vector<128x128xf32>
      %c0_20 = arith.constant 0 : index
      %c0_21 = arith.constant 0 : index
      %51 = vector.load %arg10[%c0_20, %c0_21] : memref<128x128xf32, #tpu.memory_space<vmem>>, vector<128x128xf32>
      tpu.vector_store %arg10[%c0_20, %c0_21], %50 {strides = array<i32>} : memref<128x128xf32, #tpu.memory_space<vmem>>, vector<128x128xf32>,
    } else {
    }
    return
  }
  func.func @transform_0(%arg0: i32, %arg1: i32) -> (i32, i32) {
    %c0_i32 = arith.constant 0 : i32
    %c0_i32_0 = arith.constant 0 : i32
    %c0_i32_1 = arith.constant 0 : i32
    return %c0_i32, %c0_i32_0 : i32, i32
  }
  func.func @transform_1(%arg0: i32, %arg1: i32) -> (i32, i32) {
    %c0_i32 = arith.constant 0 : i32
    %c0_i32_0 = arith.constant 0 : i32
    %c0_i32_1 = arith.constant 0 : i32
    return %c0_i32, %c0_i32_0 : i32, i32
  }
  func.func @transform_2(%arg0: i32, %arg1: i32) -> (i32, i32) {
    %c0_i32 = arith.constant 0 : i32
    %c0_i32_0 = arith.constant 0 : i32
    %c0_i32_1 = arith.constant 0 : i32
    return %c0_i32, %c0_i32_0 : i32, i32
  }
  func.func @transform_3(%arg0: i32, %arg1: i32) -> (i32, i32) {
    %c0_i32 = arith.constant 0 : i32
    %c0_i32_0 = arith.constant 0 : i32
    %c0_i32_1 = arith.constant 0 : i32
    return %c0_i32, %c0_i32_0 : i32, i32
  }
  func.func @transform_4(%arg0: i32, %arg1: i32) -> (i32, i32) {
    %c0_i32 = arith.constant 0 : i32
    %c0_i32_0 = arith.constant 0 : i32
    %c0_i32_1 = arith.constant 0 : i32
    return %c0_i32, %c0_i32_0 : i32, i32
  }
  func.func @transform_5(%arg0: i32, %arg1: i32) -> (i32, i32) {
    %c0_i32 = arith.constant 0 : i32
    %c0_i32_0 = arith.constant 0 : i32
    %c0_i32_1 = arith.constant 0 : i32
    return %c0_i32, %c0_i32_0 : i32, i32
  }
  func.func @transform_6(%arg0: i32, %arg1: i32) -> (i32, i32) {
    %c0_i32 = arith.constant 0 : i32
    %c0_i32_0 = arith.constant 0 : i32
    %c0_i32_1 = arith.constant 0 : i32
    return %c0_i32, %c0_i32_0 : i32, i32
  }
  func.func @transform_7(%arg0: i32, %arg1: i32) -> (i32, i32) {
    %c0_i32 = arith.constant 0 : i32
    %c0_i32_0 = arith.constant 0 : i32
    %c0_i32_1 = arith.constant 0 : i32
    return %c0_i32, %c0_i32_0 : i32, i32
  }
  func.func @transform_8(%arg0: i32, %arg1: i32) -> (i32, i32) {
    %0 = arith.muli %arg0, %arg1 : i32
    %c0_i32 = arith.constant 0 : i32
    %c0_i32_0 = arith.constant 0 : i32
    return %0, %c0_i32 : i32, i32
  }
}

</mosaic_0001>

<llo_original>
// kernel: gat_conv_forward.1
$region0: #{gat_conv_forward.1}
  #allocation0 [shape = 'u32[]', space=smem, size = 0x4, offset = 0x4, fixed_abs, tag = 'smem constant byte address 0x4 - core index']
  #allocation1 [shape = 'u32[144,128]{1,0:T(1,128)}', space=vmem, size = 0x12000, scoped, tag = 'internal scratch']
  #allocation2 [shape = 'bf16[256,128]{1,0:T(16,128)(2,1)}', space=vmem, size = 0x10000, scoped, tag = 'scratch operand']
  #allocation3 [shape = 'f32[1,256]{1,0:T(1,128)}', space=vmem, size = 0x400, scoped, tag = 'scratch operand']
  #allocation4 [shape = 'f32[256,1]{1,0:T(8,128)}', space=vmem, size = 0x20000, scoped, tag = 'scratch operand']
  #allocation5 [shape = 'bf16[256,128]{1,0:T(16,128)(2,1)}', space=vmem, size = 0x10000, scoped, tag = 'scratch operand']
  %s0 = inlined_call_operand.vmem [shape: bf16[256,32], index: 0, kind: input, shape index: {}]
  %s1 = inlined_call_operand.vmem [shape: bf16[32,128], index: 1, kind: input, shape index: {}]
  %s2 = inlined_call_operand.vmem [shape: bf16[1,32], index: 2, kind: input, shape index: {}]
  %s3 = inlined_call_operand.vmem [shape: f32[1,128], index: 3, kind: input, shape index: {}]
  %s4 = inlined_call_operand.vmem [shape: bf16[128,128], index: 4, kind: input, shape index: {}]
  %s5 = inlined_call_operand.vmem [shape: bf16[1,128], index: 5, kind: input, shape index: {}]
  %s6 = inlined_call_operand.vmem [shape: f32[1,128], index: 6, kind: input, shape index: {}]
  %s7 = inlined_call_operand.vmem [shape: bf16[256,256], index: 7, kind: input, shape index: {}]
  %s8 = inlined_call_operand.vmem [shape: f32[256,128], index: 8, kind: output, shape index: {}]
  %s9 = sld [smem:[#allocation0]]
  $region81: #{gat_conv_forward.1} parent=0
    _
  %s11 = ssub.s32 1, %s9
  %s12 = scalar_select 0, %s11, %s9
  loop: start=0, step=1, limit=6
  $region2: #{gat_conv_forward.1} parent=0 // loop_pre_header
    _
  $region3: #{gat_conv_forward.1} parent=0 // loop_header
    %s14 = sphi 0, %s18
    %p15 = scmp.ge.s32.totalorder %s14, 6
    %s21 = sphi 0, %s33
    %s22 = sphi 0, %s29
    %s23 = sphi 0, %s21
    %s24 = sphi 0, %s22
    %s25 = sphi 0, %s23
    %s26 = sphi 0, %s24
    %s34 = sphi 0, %s34
    %s36 = sphi 0, %s34
    %s37 = sphi 0, %s36
    %s51 = sphi 0, %s37
    %s55 = sphi 0, %s55
    %s57 = sphi 0, %s55
    %s58 = sphi 0, %s57
    %s72 = sphi 0, %s58
    %s76 = sphi 0, %s76
    %s78 = sphi 0, %s76
    %s79 = sphi 0, %s78
    %s93 = sphi 0, %s79
    %s97 = sphi 0, %s97
    %s99 = sphi 0, %s97
    %s100 = sphi 0, %s99
    %s114 = sphi 0, %s100
    %s118 = sphi 0, %s118
    %s120 = sphi 0, %s118
    %s121 = sphi 0, %s120
    %s135 = sphi 0, %s121
    %s139 = sphi 0, %s139
    %s141 = sphi 0, %s139
    %s142 = sphi 0, %s141
    %s156 = sphi 0, %s142
    %s160 = sphi 0, %s160
    %s162 = sphi 0, %s160
    %s163 = sphi 0, %s162
    %s177 = sphi 0, %s163
    %s181 = sphi 0, %s181
    %s183 = sphi 0, %s181
    %s184 = sphi 0, %s183
    %s198 = sphi 0, %s184
    %s206 = sphi 0, %s208
    %s209 = sphi 0, %s206
    %s210 = sphi 0, %s209
    %s226 = sphi 0, %s210
  $region4: #{gat_conv_forward.1} parent=0 // loop_header_branch
    %17 = sbr.rel (%p15) target = $region8
  $region5: #{gat_conv_forward.1} parent=0 // loop_body
    %s19 = ssub.s32 %s14, 1
    %s20 = ssub.s32 %s14, 2
    %s27 = sadd.s32 1, %s22
    %p28 = scmp.ge.s32.totalorder %s27, 2
    %s29 = scalar_select %p28, 0, %s27
    %s30 = sadd.s32 1, %s21
    %s31 = scalar_select %p28, %s30, %s21
    %p32 = scmp.ge.s32.totalorder %s31, 2
    %s33 = scalar_select %p32, 0, %s31
    %s35 = sadd.s32 %s34, 1
    %p38 = scmp.eq.s32.totalorder %s14, 3
    %p39 = scmp.ne.s32.totalorder %s34, %s36
    %p40 = scmp.eq.s32.totalorder %s14, 0
    %p41 = por %p39, %p40
    %p42 = scmp.ne.s32.totalorder %s34, %s36
    %p43 = scmp.eq.s32.totalorder %s19, 3
    %p44 = por %p42, %p43
    %p45 = scmp.ne.s32.totalorder %s36, %s37
    %p46 = scmp.eq.s32.totalorder %s19, 0
    %p47 = por %p45, %p46
    %p48 = scmp.ne.s32.totalorder %s36, %s37
    %p49 = scmp.eq.s32.totalorder %s20, 3
    %p50 = por %p48, %p49
    %p52 = scmp.ne.s32.totalorder %s37, %s51
    %p53 = scmp.eq.s32.totalorder %s20, 0
    %p54 = por %p52, %p53
    %s56 = sadd.s32 %s55, 1
    %p59 = scmp.eq.s32.totalorder %s14, 3
    %p60 = scmp.ne.s32.totalorder %s55, %s57
    %p61 = scmp.eq.s32.totalorder %s14, 0
    %p62 = por %p60, %p61
    %p63 = scmp.ne.s32.totalorder %s55, %s57
    %p64 = scmp.eq.s32.totalorder %s19, 3
    %p65 = por %p63, %p64
    %p66 = scmp.ne.s32.totalorder %s57, %s58
    %p67 = scmp.eq.s32.totalorder %s19, 0
    %p68 = por %p66, %p67
    %p69 = scmp.ne.s32.totalorder %s57, %s58
    %p70 = scmp.eq.s32.totalorder %s20, 3
    %p71 = por %p69, %p70
    %p73 = scmp.ne.s32.totalorder %s58, %s72
    %p74 = scmp.eq.s32.totalorder %s20, 0
    %p75 = por %p73, %p74
    %s77 = sadd.s32 %s76, 1
    %p80 = scmp.eq.s32.totalorder %s14, 3
    %p81 = scmp.ne.s32.totalorder %s76, %s78
    %p82 = scmp.eq.s32.totalorder %s14, 0
    %p83 = por %p81, %p82
    %p84 = scmp.ne.s32.totalorder %s76, %s78
    %p85 = scmp.eq.s32.totalorder %s19, 3
    %p86 = por %p84, %p85
    %p87 = scmp.ne.s32.totalorder %s78, %s79
    %p88 = scmp.eq.s32.totalorder %s19, 0
    %p89 = por %p87, %p88
    %p90 = scmp.ne.s32.totalorder %s78, %s79
    %p91 = scmp.eq.s32.totalorder %s20, 3
    %p92 = por %p90, %p91
    %p94 = scmp.ne.s32.totalorder %s79, %s93
    %p95 = scmp.eq.s32.totalorder %s20, 0
    %p96 = por %p94, %p95
    %s98 = sadd.s32 %s97, 1
    %p101 = scmp.eq.s32.totalorder %s14, 3
    %p102 = scmp.ne.s32.totalorder %s97, %s99
    %p103 = scmp.eq.s32.totalorder %s14, 0
    %p104 = por %p102, %p103
    %p105 = scmp.ne.s32.totalorder %s97, %s99
    %p106 = scmp.eq.s32.totalorder %s19, 3
    %p107 = por %p105, %p106
    %p108 = scmp.ne.s32.totalorder %s99, %s100
    %p109 = scmp.eq.s32.totalorder %s19, 0
    %p110 = por %p108, %p109
    %p111 = scmp.ne.s32.totalorder %s99, %s100
    %p112 = scmp.eq.s32.totalorder %s20, 3
    %p113 = por %p111, %p112
    %p115 = scmp.ne.s32.totalorder %s100, %s114
    %p116 = scmp.eq.s32.totalorder %s20, 0
    %p117 = por %p115, %p116
    %s119 = sadd.s32 %s118, 1
    %p122 = scmp.eq.s32.totalorder %s14, 3
    %p123 = scmp.ne.s32.totalorder %s118, %s120
    %p124 = scmp.eq.s32.totalorder %s14, 0
    %p125 = por %p123, %p124
    %p126 = scmp.ne.s32.totalorder %s118, %s120
    %p127 = scmp.eq.s32.totalorder %s19, 3
    %p128 = por %p126, %p127
    %p129 = scmp.ne.s32.totalorder %s120, %s121
    %p130 = scmp.eq.s32.totalorder %s19, 0
    %p131 = por %p129, %p130
    %p132 = scmp.ne.s32.totalorder %s120, %s121
    %p133 = scmp.eq.s32.totalorder %s20, 3
    %p134 = por %p132, %p133
    %p136 = scmp.ne.s32.totalorder %s121, %s135
    %p137 = scmp.eq.s32.totalorder %s20, 0
    %p138 = por %p136, %p137
    %s140 = sadd.s32 %s139, 1
    %p143 = scmp.eq.s32.totalorder %s14, 3
    %p144 = scmp.ne.s32.totalorder %s139, %s141
    %p145 = scmp.eq.s32.totalorder %s14, 0
    %p146 = por %p144, %p145
    %p147 = scmp.ne.s32.totalorder %s139, %s141
    %p148 = scmp.eq.s32.totalorder %s19, 3
    %p149 = por %p147, %p148
    %p150 = scmp.ne.s32.totalorder %s141, %s142
    %p151 = scmp.eq.s32.totalorder %s19, 0
    %p152 = por %p150, %p151
    %p153 = scmp.ne.s32.totalorder %s141, %s142
    %p154 = scmp.eq.s32.totalorder %s20, 3
    %p155 = por %p153, %p154
    %p157 = scmp.ne.s32.totalorder %s142, %s156
    %p158 = scmp.eq.s32.totalorder %s20, 0
    %p159 = por %p157, %p158
    %s161 = sadd.s32 %s160, 1
    %p164 = scmp.eq.s32.totalorder %s14, 3
    %p165 = scmp.ne.s32.totalorder %s160, %s162
    %p166 = scmp.eq.s32.totalorder %s14, 0
    %p167 = por %p165, %p166
    %p168 = scmp.ne.s32.totalorder %s160, %s162
    %p169 = scmp.eq.s32.totalorder %s19, 3
    %p170 = por %p168, %p169
    %p171 = scmp.ne.s32.totalorder %s162, %s163
    %p172 = scmp.eq.s32.totalorder %s19, 0
    %p173 = por %p171, %p172
    %p174 = scmp.ne.s32.totalorder %s162, %s163
    %p175 = scmp.eq.s32.totalorder %s20, 3
    %p176 = por %p174, %p175
    %p178 = scmp.ne.s32.totalorder %s163, %s177
    %p179 = scmp.eq.s32.totalorder %s20, 0
    %p180 = por %p178, %p179
    %s182 = sadd.s32 %s181, 1
    %p185 = scmp.eq.s32.totalorder %s14, 3
    %p186 = scmp.ne.s32.totalorder %s181, %s183
    %p187 = scmp.eq.s32.totalorder %s14, 0
    %p188 = por %p186, %p187
    %p189 = scmp.ne.s32.totalorder %s181, %s183
    %p190 = scmp.eq.s32.totalorder %s19, 3
    %p191 = por %p189, %p190
    %p192 = scmp.ne.s32.totalorder %s183, %s184
    %p193 = scmp.eq.s32.totalorder %s19, 0
    %p194 = por %p192, %p193
    %p195 = scmp.ne.s32.totalorder %s183, %s184
    %p196 = scmp.eq.s32.totalorder %s20, 3
    %p197 = por %p195, %p196
    %p199 = scmp.ne.s32.totalorder %s184, %s198
    %p200 = scmp.eq.s32.totalorder %s20, 0
    %p201 = por %p199, %p200
    %s202 = smul.u32 %s21, %s22
    %s203 = smul.u32 %s33, %s29
    %s204 = ssub.s32 %s202, %s203
    %p205 = scmp.eq.s32.totalorder %s204, 0
    %s207 = sadd.s32 %s206, 1
    %s208 = scalar_select %p205, %s206, %s207
    %p211 = pneg %p205
    %p212 = scmp.eq.s32.totalorder %s14, 3
    %p213 = por %p211, %p212
    %p214 = scmp.ne.s32.totalorder %s206, %s209
    %p215 = scmp.eq.s32.totalorder %s14, 0
    %p216 = por %p214, %p215
    %p217 = scmp.ne.s32.totalorder %s206, %s209
    %p218 = scmp.eq.s32.totalorder %s19, 3
    %p219 = por %p217, %p218
    %p220 = scmp.ne.s32.totalorder %s209, %s210
    %p221 = scmp.eq.s32.totalorder %s19, 0
    %p222 = por %p220, %p221
    %p223 = scmp.ne.s32.totalorder %s209, %s210
    %p224 = scmp.eq.s32.totalorder %s20, 3
    %p225 = por %p223, %p224
    %p227 = scmp.ne.s32.totalorder %s210, %s226
    %p228 = scmp.eq.s32.totalorder %s20, 0
    %p229 = por %p227, %p228
    %p230 = scmp.le.s32.totalorder 1, %s14
    %p231 = scmp.lt.s32.totalorder %s14, 5
    %p232 = pnand %p230, %p231
    %p233 = pneg %p232
    // Predicated region
    $region9: #{gat_conv_forward.1} parent=5 // pred_check
      _
    $region10: #{gat_conv_forward.1} parent=5 // pred_check_branch
      %235 = sbr.rel (%p232) target = $region12
    $region11: #{gat_conv_forward.1} parent=5 // pred_region
      %s236 = ssub.s32 %s14, 1
      // Predicated region
      $region13: #{gat_conv_forward.1} parent=11 // pred_check
        %p237 = pneg %p47
      $region14: #{gat_conv_forward.1} parent=11 // pred_check_branch
        %239 = sbr.rel (%p237) target = $region16
      $region15: #{gat_conv_forward.1} parent=11 // pred_region
        _
      $region16: #{gat_conv_forward.1} parent=11 // pred_fallthru
        _
      // Predicated region
      $region17: #{gat_conv_forward.1} parent=11 // pred_check
        %p240 = pneg %p68
      $region18: #{gat_conv_forward.1} parent=11 // pred_check_branch
        %242 = sbr.rel (%p240) target = $region20
      $region19: #{gat_conv_forward.1} parent=11 // pred_region
        _
      $region20: #{gat_conv_forward.1} parent=11 // pred_fallthru
        _
      // Predicated region
      $region21: #{gat_conv_forward.1} parent=11 // pred_check
        %p243 = pneg %p89
      $region22: #{gat_conv_forward.1} parent=11 // pred_check_branch
        %245 = sbr.rel (%p243) target = $region24
      $region23: #{gat_conv_forward.1} parent=11 // pred_region
        _
      $region24: #{gat_conv_forward.1} parent=11 // pred_fallthru
        _
      // Predicated region
      $region25: #{gat_conv_forward.1} parent=11 // pred_check
        %p246 = pneg %p110
      $region26: #{gat_conv_forward.1} parent=11 // pred_check_branch
        %248 = sbr.rel (%p246) target = $region28
      $region27: #{gat_conv_forward.1} parent=11 // pred_region
        _
      $region28: #{gat_conv_forward.1} parent=11 // pred_fallthru
        _
      // Predicated region
      $region29: #{gat_conv_forward.1} parent=11 // pred_check
        %p249 = pneg %p131
      $region30: #{gat_conv_forward.1} parent=11 // pred_check_branch
        %251 = sbr.rel (%p249) target = $region32
      $region31: #{gat_conv_forward.1} parent=11 // pred_region
        _
      $region32: #{gat_conv_forward.1} parent=11 // pred_fallthru
        _
      // Predicated region
      $region33: #{gat_conv_forward.1} parent=11 // pred_check
        %p252 = pneg %p152
      $region34: #{gat_conv_forward.1} parent=11 // pred_check_branch
        %254 = sbr.rel (%p252) target = $region36
      $region35: #{gat_conv_forward.1} parent=11 // pred_region
        _
      $region36: #{gat_conv_forward.1} parent=11 // pred_fallthru
        _
      // Predicated region
      $region37: #{gat_conv_forward.1} parent=11 // pred_check
        %p255 = pneg %p173
      $region38: #{gat_conv_forward.1} parent=11 // pred_check_branch
        %257 = sbr.rel (%p255) target = $region40
      $region39: #{gat_conv_forward.1} parent=11 // pred_region
        _
      $region40: #{gat_conv_forward.1} parent=11 // pred_fallthru
        _
      // Predicated region
      $region41: #{gat_conv_forward.1} parent=11 // pred_check
        %p258 = pneg %p194
      $region42: #{gat_conv_forward.1} parent=11 // pred_check_branch
        %260 = sbr.rel (%p258) target = $region44
      $region43: #{gat_conv_forward.1} parent=11 // pred_region
        _
      $region44: #{gat_conv_forward.1} parent=11 // pred_fallthru
        _
    $region12: #{gat_conv_forward.1} parent=5 // pred_fallthru
      _
    %p261 = scmp.lt.s32.totalorder %s14, 4
    // Predicated region
    $region45: #{gat_conv_forward.1} parent=5 // pred_check
      %p262 = pneg %p261
    $region46: #{gat_conv_forward.1} parent=5 // pred_check_branch
      %264 = sbr.rel (%p262) target = $region48
    $region47: #{gat_conv_forward.1} parent=5 // pred_region
      _
    $region48: #{gat_conv_forward.1} parent=5 // pred_fallthru
      _
    %p265 = scmp.le.s32.totalorder 1, %s14
    %p266 = scmp.lt.s32.totalorder %s14, 5
    %p267 = pnand %p265, %p266
    %p268 = pneg %p267
    // Predicated region
    $region49: #{gat_conv_forward.1} parent=5 // pred_check
      _
    $region50: #{gat_conv_forward.1} parent=5 // pred_check_branch
      %270 = sbr.rel (%p267) target = $region52
    $region51: #{gat_conv_forward.1} parent=5 // pred_region
      %s271 = ssub.s32 %s14, 1
      %p272 = pneg %p47
      %p273 = pneg %p44
      %p274 = pneg %p68
      %p275 = pneg %p65
      %p276 = pneg %p89
      %p277 = pneg %p86
      %p278 = pneg %p110
      %p279 = pneg %p107
      %p280 = pneg %p131
      %p281 = pneg %p128
      %p282 = pneg %p152
      %p283 = pneg %p149
      %p284 = pneg %p173
      %p285 = pneg %p170
      %p286 = pneg %p194
      %p287 = pneg %p191
      %p288 = pneg %p222
      %p289 = pneg %p219
      %s290 = smul.u32 %s23, %s24
      %s291 = smul.u32 16, %s290
      %p292 = scmp.lt.s32.totalorder %s291, 31
      %s293 = scalar_select %p292, %s291, 31
      %s294 = smul.addr %s293, 8
      %s295 = scalar_lea.vmem %s8, %s294
      %s296 = smul.u32 %s23, %s24
      %s297 = smul.u32 16, %s296
      %p298 = scmp.lt.s32.totalorder %s297, 31
      %s299 = scalar_select %p298, %s297, 31
      %s300 = smul.addr %s299, 8
      %s301 = scalar_lea.vmem %s8, %s300
      %s302 = smul.u32 %s23, %s24
      %s303 = smul.u32 16, %s302
      %s305 = smul.u32 %s24, 128
      %p306 = scmp.eq.s32.totalorder %s23, 0
      %p307 = scmp.eq.s32.totalorder %s24, 0
      %p308 = pnand %p306, %p307
      %p309 = pneg %p308
      // Predicated region
      $region53: #{gat_conv_forward.1} parent=51 // pred_check
        _
      $region54: #{gat_conv_forward.1} parent=51 // pred_check_branch
        %311 = sbr.rel (%p308) target = $region56
      $region55: #{gat_conv_forward.1} parent=51 // pred_region
        %v312 = vld [vmem:[%s0] sm:$0xf]
        %v313 = vld [vmem:[%s0 + $0x4] sm:$0xf]
        %v314 = vld [vmem:[%s0 + $0x8] sm:$0xf]
        %v315 = vld [vmem:[%s0 + $0xc] sm:$0xf]
        %v316 = vld [vmem:[%s0 + $0x10] sm:$0xf]
        %v317 = vld [vmem:[%s0 + $0x14] sm:$0xf]
        %v318 = vld [vmem:[%s0 + $0x18] sm:$0xf]
        %v319 = vld [vmem:[%s0 + $0x1c] sm:$0xf]
        %v320 = vld [vmem:[%s0 + $0x20] sm:$0xf]
        %v321 = vld [vmem:[%s0 + $0x24] sm:$0xf]
        %v322 = vld [vmem:[%s0 + $0x28] sm:$0xf]
        %v323 = vld [vmem:[%s0 + $0x2c] sm:$0xf]
        %v324 = vld [vmem:[%s0 + $0x30] sm:$0xf]
        %v325 = vld [vmem:[%s0 + $0x34] sm:$0xf]
        %v326 = vld [vmem:[%s0 + $0x38] sm:$0xf]
        %v327 = vld [vmem:[%s0 + $0x3c] sm:$0xf]
        %v328 = vld [vmem:[%s0 + $0x40] sm:$0xf]
        %v329 = vld [vmem:[%s0 + $0x44] sm:$0xf]
        %v330 = vld [vmem:[%s0 + $0x48] sm:$0xf]
        %v331 = vld [vmem:[%s0 + $0x4c] sm:$0xf]
        %v332 = vld [vmem:[%s0 + $0x50] sm:$0xf]
        %v333 = vld [vmem:[%s0 + $0x54] sm:$0xf]
        %v334 = vld [vmem:[%s0 + $0x58] sm:$0xf]
        %v335 = vld [vmem:[%s0 + $0x5c] sm:$0xf]
        %v336 = vld [vmem:[%s0 + $0x60] sm:$0xf]
        %v337 = vld [vmem:[%s0 + $0x64] sm:$0xf]
        %v338 = vld [vmem:[%s0 + $0x68] sm:$0xf]
        %v339 = vld [vmem:[%s0 + $0x6c] sm:$0xf]
        %v340 = vld [vmem:[%s0 + $0x70] sm:$0xf]
        %v341 = vld [vmem:[%s0 + $0x74] sm:$0xf]
        %v342 = vld [vmem:[%s0 + $0x78] sm:$0xf]
        %v343 = vld [vmem:[%s0 + $0x7c] sm:$0xf]
        %v344 = vld [vmem:[%s1] sm:$0xf]
        %v345 = vld [vmem:[%s1 + $0x4] sm:$0xf]
        %v346 = vld [vmem:[%s1 + $0x8] sm:$0xf]
        %v347 = vld [vmem:[%s1 + $0xc] sm:$0xf]
        %v380 = vunpack.c.l.b16 %v312
        %v381 = vunpack.c.l.b16 %v313
        %v382 = vunpack.c.l.b16 %v314
        %v383 = vunpack.c.l.b16 %v315
        %v384 = vunpack.c.l.b16 %v316
        %v385 = vunpack.c.l.b16 %v317
        %v386 = vunpack.c.l.b16 %v318
        %v387 = vunpack.c.l.b16 %v319
        %v388 = vunpack.c.l.b16 %v320
        %v389 = vunpack.c.l.b16 %v321
        %v390 = vunpack.c.l.b16 %v322
        %v391 = vunpack.c.l.b16 %v323
        %v392 = vunpack.c.l.b16 %v324
        %v393 = vunpack.c.l.b16 %v325
        %v394 = vunpack.c.l.b16 %v326
        %v395 = vunpack.c.l.b16 %v327
        %v396 = vunpack.c.l.b16 %v328
        %v397 = vunpack.c.l.b16 %v329
        %v398 = vunpack.c.l.b16 %v330
        %v399 = vunpack.c.l.b16 %v331
        %v400 = vunpack.c.l.b16 %v332
        %v401 = vunpack.c.l.b16 %v333
        %v402 = vunpack.c.l.b16 %v334
        %v403 = vunpack.c.l.b16 %v335
        %v404 = vunpack.c.l.b16 %v336
        %v405 = vunpack.c.l.b16 %v337
        %v406 = vunpack.c.l.b16 %v338
        %v407 = vunpack.c.l.b16 %v339
        %v408 = vunpack.c.l.b16 %v340
        %v409 = vunpack.c.l.b16 %v341
        %v410 = vunpack.c.l.b16 %v342
        %v411 = vunpack.c.l.b16 %v343
        %v412 = vpack.c.b16 %v381, %v380
        %v413 = vpack.c.b16 %v383, %v382
        %v414 = vpack.c.b16 %v385, %v384
        %v415 = vpack.c.b16 %v387, %v386
        %v416 = vpack.c.b16 %v389, %v388
        %v417 = vpack.c.b16 %v391, %v390
        %v418 = vpack.c.b16 %v393, %v392
        %v419 = vpack.c.b16 %v395, %v394
        %v420 = vpack.c.b16 %v397, %v396
        %v421 = vpack.c.b16 %v399, %v398
        %v422 = vpack.c.b16 %v401, %v400
        %v423 = vpack.c.b16 %v403, %v402
        %v424 = vpack.c.b16 %v405, %v404
        %v425 = vpack.c.b16 %v407, %v406
        %v426 = vpack.c.b16 %v409, %v408
        %v427 = vpack.c.b16 %v411, %v410
        %v432 = vunpack.c.l.b16 %v344
        %v433 = vunpack.c.l.b16 %v345
        %v434 = vunpack.c.l.b16 %v346
        %v435 = vunpack.c.l.b16 %v347
        %v436 = vpack.c.b16 %v433, %v432
        %v437 = vpack.c.b16 %v435, %v434
        %vm440 = vcmask 261120
        %v442 = vsel %vm440, %v412, 0
        %v445 = vsel %vm440, %v413, 0
        %v448 = vsel %vm440, %v414, 0
        %v451 = vsel %vm440, %v415, 0
        %v454 = vsel %vm440, %v416, 0
        %v457 = vsel %vm440, %v417, 0
        %v460 = vsel %vm440, %v418, 0
        %v463 = vsel %vm440, %v419, 0
        %v466 = vsel %vm440, %v420, 0
        %v469 = vsel %vm440, %v421, 0
        %v472 = vsel %vm440, %v422, 0
        %v475 = vsel %vm440, %v423, 0
        %v478 = vsel %vm440, %v424, 0
        %v481 = vsel %vm440, %v425, 0
        %v484 = vsel %vm440, %v426, 0
        %v487 = vsel %vm440, %v427, 0
        %489 = vmatprep.subr.bf16.mxu0 0
        %490 = vmatpush1.bf16.msra.mxu0 %v436
        %491 = vmatprep.subr.bf16.mxu0 0
        %492 = vmatpush1.bf16.msra.mxu0 %v437
        %493 = vmatprep.subr.bf16.mxu0 0
        %494 = vmatpush1.bf16.msra.mxu0 0
        %495 = vmatprep.subr.bf16.mxu0 0
        %496 = vmatpush1.bf16.msra.mxu0 0
        %497 = vmatprep.subr.bf16.mxu0 0
        %498 = vmatpush1.bf16.msra.mxu0 0
        %499 = vmatprep.subr.bf16.mxu0 0
        %500 = vmatpush1.bf16.msra.mxu0 0
        %501 = vmatprep.subr.bf16.mxu0 0
        %502 = vmatpush1.bf16.msra.mxu0 0
        %503 = vmatprep.subr.bf16.mxu0 0
        %504 = vmatpush1.bf16.msra.mxu0 0
        %505 = vmatprep.subr.bf16.mxu0 0
        %506 = vmatpush1.bf16.msra.mxu0 0
        %507 = vmatprep.subr.bf16.mxu0 0
        %508 = vmatpush1.bf16.msra.mxu0 0
        %509 = vmatprep.subr.bf16.mxu0 0
        %510 = vmatpush1.bf16.msra.mxu0 0
        %511 = vmatprep.subr.bf16.mxu0 0
        %512 = vmatpush1.bf16.msra.mxu0 0
        %513 = vmatprep.subr.bf16.mxu0 0
        %514 = vmatpush1.bf16.msra.mxu0 0
        %515 = vmatprep.subr.bf16.mxu0 0
        %516 = vmatpush1.bf16.msra.mxu0 0
        %517 = vmatprep.subr.bf16.mxu0 0
        %518 = vmatpush1.bf16.msra.mxu0 0
        %519 = vmatprep.subr.bf16.mxu0 0
        %520 = vmatpush1.bf16.msra.mxu0 0
        %521 = vmatprep.mubr.bf16.mxu0 0
        %522 = vmatmul.mubr.bf16.gmra.mrb[0].mxu0 %v442
        %v523 = vpop.f32.mrb[0].mxu0
        %v524 = vadd.f32 0.0, %v523
        %v525 = vpop.f32.mrb[0].mxu0
        %v526 = vpop.f32.mrb[0].mxu0
        %v527 = vadd.f32 0.0, %v526
        %v528 = vpop.f32.mrb[0].mxu0
        %529 = vmatprep.mubr.bf16.mxu0 0
        %530 = vmatmul.mubr.bf16.gmra.mrb[0].mxu0 %v445
        %v531 = vpop.f32.mrb[0].mxu0
        %v532 = vadd.f32 0.0, %v531
        %v533 = vpop.f32.mrb[0].mxu0
        %v534 = vpop.f32.mrb[0].mxu0
        %v535 = vadd.f32 0.0, %v534
        %v536 = vpop.f32.mrb[0].mxu0
        %537 = vmatprep.mubr.bf16.mxu0 0
        %538 = vmatmul.mubr.bf16.gmra.mrb[0].mxu0 %v448
        %v539 = vpop.f32.mrb[0].mxu0
        %v540 = vadd.f32 0.0, %v539
        %v541 = vpop.f32.mrb[0].mxu0
        %v542 = vpop.f32.mrb[0].mxu0
        %v543 = vadd.f32 0.0, %v542
        %v544 = vpop.f32.mrb[0].mxu0
        %545 = vmatprep.mubr.bf16.mxu0 0
        %546 = vmatmul.mubr.bf16.gmra.mrb[0].mxu0 %v451
        %v547 = vpop.f32.mrb[0].mxu0
        %v548 = vadd.f32 0.0, %v547
        %v549 = vpop.f32.mrb[0].mxu0
        %v550 = vpop.f32.mrb[0].mxu0
        %v551 = vadd.f32 0.0, %v550
        %v552 = vpop.f32.mrb[0].mxu0
        %553 = vmatprep.mubr.bf16.mxu0 0
        %554 = vmatmul.mubr.bf16.gmra.mrb[0].mxu0 %v454
        %v555 = vpop.f32.mrb[0].mxu0
        %v556 = vadd.f32 0.0, %v555
        %v557 = vpop.f32.mrb[0].mxu0
        %v558 = vpop.f32.mrb[0].mxu0
        %v559 = vadd.f32 0.0, %v558
        %v560 = vpop.f32.mrb[0].mxu0
        %561 = vmatprep.mubr.bf16.mxu0 0
        %562 = vmatmul.mubr.bf16.gmra.mrb[0].mxu0 %v457
        %v563 = vpop.f32.mrb[0].mxu0
        %v564 = vadd.f32 0.0, %v563
        %v565 = vpop.f32.mrb[0].mxu0
        %v566 = vpop.f32.mrb[0].mxu0
        %v567 = vadd.f32 0.0, %v566
        %v568 = vpop.f32.mrb[0].mxu0
        %569 = vmatprep.mubr.bf16.mxu0 0
        %570 = vmatmul.mubr.bf16.gmra.mrb[0].mxu0 %v460
        %v571 = vpop.f32.mrb[0].mxu0
        %v572 = vadd.f32 0.0, %v571
        %v573 = vpop.f32.mrb[0].mxu0
        %v574 = vpop.f32.mrb[0].mxu0
        %v575 = vadd.f32 0.0, %v574
        %v576 = vpop.f32.mrb[0].mxu0
        %577 = vmatprep.mubr.bf16.mxu0 0
        %578 = vmatmul.mubr.bf16.gmra.mrb[0].mxu0 %v463
        %v579 = vpop.f32.mrb[0].mxu0
        %v580 = vadd.f32 0.0, %v579
        %v581 = vpop.f32.mrb[0].mxu0
        %v582 = vpop.f32.mrb[0].mxu0
        %v583 = vadd.f32 0.0, %v582
        %v584 = vpop.f32.mrb[0].mxu0
        %585 = vmatprep.mubr.bf16.mxu0 0
        %586 = vmatmul.mubr.bf16.gmra.mrb[0].mxu0 %v466
        %v587 = vpop.f32.mrb[0].mxu0
        %v588 = vadd.f32 0.0, %v587
        %v589 = vpop.f32.mrb[0].mxu0
        %v590 = vpop.f32.mrb[0].mxu0
        %v591 = vadd.f32 0.0, %v590
        %v592 = vpop.f32.mrb[0].mxu0
        %593 = vmatprep.mubr.bf16.mxu0 0
        %594 = vmatmul.mubr.bf16.gmra.mrb[0].mxu0 %v469
        %v595 = vpop.f32.mrb[0].mxu0
        %v596 = vadd.f32 0.0, %v595
        %v597 = vpop.f32.mrb[0].mxu0
        %v598 = vpop.f32.mrb[0].mxu0
        %v599 = vadd.f32 0.0, %v598
        %v600 = vpop.f32.mrb[0].mxu0
        %601 = vmatprep.mubr.bf16.mxu0 0
        %602 = vmatmul.mubr.bf16.gmra.mrb[0].mxu0 %v472
        %v603 = vpop.f32.mrb[0].mxu0
        %v604 = vadd.f32 0.0, %v603
        %v605 = vpop.f32.mrb[0].mxu0
        %v606 = vpop.f32.mrb[0].mxu0
        %v607 = vadd.f32 0.0, %v606
        %v608 = vpop.f32.mrb[0].mxu0
        %609 = vmatprep.mubr.bf16.mxu0 0
        %610 = vmatmul.mubr.bf16.gmra.mrb[0].mxu0 %v475
        %v611 = vpop.f32.mrb[0].mxu0
        %v612 = vadd.f32 0.0, %v611
        %v613 = vpop.f32.mrb[0].mxu0
        %v614 = vpop.f32.mrb[0].mxu0
        %v615 = vadd.f32 0.0, %v614
        %v616 = vpop.f32.mrb[0].mxu0
        %617 = vmatprep.mubr.bf16.mxu0 0
        %618 = vmatmul.mubr.bf16.gmra.mrb[0].mxu0 %v478
        %v619 = vpop.f32.mrb[0].mxu0
        %v620 = vadd.f32 0.0, %v619
        %v621 = vpop.f32.mrb[0].mxu0
        %v622 = vpop.f32.mrb[0].mxu0
        %v623 = vadd.f32 0.0, %v622
        %v624 = vpop.f32.mrb[0].mxu0
        %625 = vmatprep.mubr.bf16.mxu0 0
        %626 = vmatmul.mubr.bf16.gmra.mrb[0].mxu0 %v481
        %v627 = vpop.f32.mrb[0].mxu0
        %v628 = vadd.f32 0.0, %v627
        %v629 = vpop.f32.mrb[0].mxu0
        %v630 = vpop.f32.mrb[0].mxu0
        %v631 = vadd.f32 0.0, %v630
        %v632 = vpop.f32.mrb[0].mxu0
        %633 = vmatprep.mubr.bf16.mxu0 0
        %634 = vmatmul.mubr.bf16.gmra.mrb[0].mxu0 %v484
        %v635 = vpop.f32.mrb[0].mxu0
        %v636 = vadd.f32 0.0, %v635
        %v637 = vpop.f32.mrb[0].mxu0
        %v638 = vpop.f32.mrb[0].mxu0
        %v639 = vadd.f32 0.0, %v638
        %v640 = vpop.f32.mrb[0].mxu0
        %641 = vmatprep.mubr.bf16.mxu0 0
        %642 = vmatmul.mubr.bf16.gmra.mrb[0].mxu0 %v487
        %v643 = vpop.f32.mrb[0].mxu0
        %v644 = vadd.f32 0.0, %v643
        %v645 = vpop.f32.mrb[0].mxu0
        %v646 = vpop.f32.mrb[0].mxu0
        %v647 = vadd.f32 0.0, %v646
        %v648 = vpop.f32.mrb[0].mxu0
        %649 = vdwg.mxu0
        %v650 = vpack.c.bf16 %v527, %v524
        %v651 = vpack.c.bf16 %v535, %v532
        %v652 = vpack.c.bf16 %v543, %v540
        %v653 = vpack.c.bf16 %v551, %v548
        %v654 = vpack.c.bf16 %v559, %v556
        %v655 = vpack.c.bf16 %v567, %v564
        %v656 = vpack.c.bf16 %v575, %v572
        %v657 = vpack.c.bf16 %v583, %v580
        %v658 = vpack.c.bf16 %v591, %v588
        %v659 = vpack.c.bf16 %v599, %v596
        %v660 = vpack.c.bf16 %v607, %v604
        %v661 = vpack.c.bf16 %v615, %v612
        %v662 = vpack.c.bf16 %v623, %v620
        %v663 = vpack.c.bf16 %v631, %v628
        %v664 = vpack.c.bf16 %v639, %v636
        %v665 = vpack.c.bf16 %v647, %v644
        %666 = vst [vmem:[#allocation2] sm:$0xff] %v650
        %667 = vst [vmem:[#allocation2 + $0x8] sm:$0xff] %v651
        %668 = vst [vmem:[#allocation2 + $0x10] sm:$0xff] %v652
        %669 = vst [vmem:[#allocation2 + $0x18] sm:$0xff] %v653
        %670 = vst [vmem:[#allocation2 + $0x20] sm:$0xff] %v654
        %671 = vst [vmem:[#allocation2 + $0x28] sm:$0xff] %v655
        %672 = vst [vmem:[#allocation2 + $0x30] sm:$0xff] %v656
        %673 = vst [vmem:[#allocation2 + $0x38] sm:$0xff] %v657
        %674 = vst [vmem:[#allocation2 + $0x40] sm:$0xff] %v658
        %675 = vst [vmem:[#allocation2 + $0x48] sm:$0xff] %v659
        %676 = vst [vmem:[#allocation2 + $0x50] sm:$0xff] %v660
        %677 = vst [vmem:[#allocation2 + $0x58] sm:$0xff] %v661
        %678 = vst [vmem:[#allocation2 + $0x60] sm:$0xff] %v662
        %679 = vst [vmem:[#allocation2 + $0x68] sm:$0xff] %v663
        %680 = vst [vmem:[#allocation2 + $0x70] sm:$0xff] %v664
        %681 = vst [vmem:[#allocation2 + $0x78] sm:$0xff] %v665
        %714 = vrot.lane.b32.xlu0 %v524, 1
        %v715 = vpop.permute.xlu0 %714
        %716 = vrot.lane.b32.xlu0 %v527, 1
        %v717 = vpop.permute.xlu0 %716
        %718 = vrot.lane.b32.xlu0 %v532, 1
        %v719 = vpop.permute.xlu0 %718
        %720 = vrot.lane.b32.xlu0 %v535, 1
        %v721 = vpop.permute.xlu0 %720
        %722 = vrot.lane.b32.xlu0 %v540, 1
        %v723 = vpop.permute.xlu0 %722
        %724 = vrot.lane.b32.xlu0 %v543, 1
        %v725 = vpop.permute.xlu0 %724
        %726 = vrot.lane.b32.xlu0 %v548, 1
        %v727 = vpop.permute.xlu0 %726
        %728 = vrot.lane.b32.xlu0 %v551, 1
        %v729 = vpop.permute.xlu0 %728
        %730 = vrot.lane.b32.xlu0 %v556, 1
        %v731 = vpop.permute.xlu0 %730
        %732 = vrot.lane.b32.xlu0 %v559, 1
        %v733 = vpop.permute.xlu0 %732
        %734 = vrot.lane.b32.xlu0 %v564, 1
        %v735 = vpop.permute.xlu0 %734
        %736 = vrot.lane.b32.xlu0 %v567, 1
        %v737 = vpop.permute.xlu0 %736
        %738 = vrot.lane.b32.xlu0 %v572, 1
        %v739 = vpop.permute.xlu0 %738
        %740 = vrot.lane.b32.xlu0 %v575, 1
        %v741 = vpop.permute.xlu0 %740
        %742 = vrot.lane.b32.xlu0 %v580, 1
        %v743 = vpop.permute.xlu0 %742
        %744 = vrot.lane.b32.xlu0 %v583, 1
        %v745 = vpop.permute.xlu0 %744
        %746 = vrot.lane.b32.xlu0 %v588, 1
        %v747 = vpop.permute.xlu0 %746
        %748 = vrot.lane.b32.xlu0 %v591, 1
        %v749 = vpop.permute.xlu0 %748
        %750 = vrot.lane.b32.xlu0 %v596, 1
        %v751 = vpop.permute.xlu0 %750
        %752 = vrot.lane.b32.xlu0 %v599, 1
        %v753 = vpop.permute.xlu0 %752
        %754 = vrot.lane.b32.xlu0 %v604, 1
        %v755 = vpop.permute.xlu0 %754
        %756 = vrot.lane.b32.xlu0 %v607, 1
        %v757 = vpop.permute.xlu0 %756
        %758 = vrot.lane.b32.xlu0 %v612, 1
        %v759 = vpop.permute.xlu0 %758
        %760 = vrot.lane.b32.xlu0 %v615, 1
        %v761 = vpop.permute.xlu0 %760
        %762 = vrot.lane.b32.xlu0 %v620, 1
        %v763 = vpop.permute.xlu0 %762
        %764 = vrot.lane.b32.xlu0 %v623, 1
        %v765 = vpop.permute.xlu0 %764
        %766 = vrot.lane.b32.xlu0 %v628, 1
        %v767 = vpop.permute.xlu0 %766
        %768 = vrot.lane.b32.xlu0 %v631, 1
        %v769 = vpop.permute.xlu0 %768
        %770 = vrot.lane.b32.xlu0 %v636, 1
        %v771 = vpop.permute.xlu0 %770
        %772 = vrot.lane.b32.xlu0 %v639, 1
        %v773 = vpop.permute.xlu0 %772
        %774 = vrot.lane.b32.xlu0 %v644, 1
        %v775 = vpop.permute.xlu0 %774
        %776 = vrot.lane.b32.xlu0 %v647, 1
        %v777 = vpop.permute.xlu0 %776
        %vm810 = vcmask 7168
        %811 = vst.msk [vmem:[#allocation4] sm:$0xff] %vm810, %v715
        %812 = vst.msk [vmem:[#allocation4 + $0x8] sm:$0xff] %vm810, %v717
        %813 = vst.msk [vmem:[#allocation4 + $0x10] sm:$0xff] %vm810, %v719
        %814 = vst.msk [vmem:[#allocation4 + $0x18] sm:$0xff] %vm810, %v721
        %815 = vst.msk [vmem:[#allocation4 + $0x20] sm:$0xff] %vm810, %v723
        %816 = vst.msk [vmem:[#allocation4 + $0x28] sm:$0xff] %vm810, %v725
        %817 = vst.msk [vmem:[#allocation4 + $0x30] sm:$0xff] %vm810, %v727
        %818 = vst.msk [vmem:[#allocation4 + $0x38] sm:$0xff] %vm810, %v729
        %819 = vst.msk [vmem:[#allocation4 + $0x40] sm:$0xff] %vm810, %v731
        %820 = vst.msk [vmem:[#allocation4 + $0x48] sm:$0xff] %vm810, %v733
        %821 = vst.msk [vmem:[#allocation4 + $0x50] sm:$0xff] %vm810, %v735
        %822 = vst.msk [vmem:[#allocation4 + $0x58] sm:$0xff] %vm810, %v737
        %823 = vst.msk [vmem:[#allocation4 + $0x60] sm:$0xff] %vm810, %v739
        %824 = vst.msk [vmem:[#allocation4 + $0x68] sm:$0xff] %vm810, %v741
        %825 = vst.msk [vmem:[#allocation4 + $0x70] sm:$0xff] %vm810, %v743
        %826 = vst.msk [vmem:[#allocation4 + $0x78] sm:$0xff] %vm810, %v745
        %827 = vst.msk [vmem:[#allocation4 + $0x80] sm:$0xff] %vm810, %v747
        %828 = vst.msk [vmem:[#allocation4 + $0x88] sm:$0xff] %vm810, %v749
        %829 = vst.msk [vmem:[#allocation4 + $0x90] sm:$0xff] %vm810, %v751
        %830 = vst.msk [vmem:[#allocation4 + $0x98] sm:$0xff] %vm810, %v753
        %831 = vst.msk [vmem:[#allocation4 + $0xa0] sm:$0xff] %vm810, %v755
        %832 = vst.msk [vmem:[#allocation4 + $0xa8] sm:$0xff] %vm810, %v757
        %833 = vst.msk [vmem:[#allocation4 + $0xb0] sm:$0xff] %vm810, %v759
        %834 = vst.msk [vmem:[#allocation4 + $0xb8] sm:$0xff] %vm810, %v761
        %835 = vst.msk [vmem:[#allocation4 + $0xc0] sm:$0xff] %vm810, %v763
        %836 = vst.msk [vmem:[#allocation4 + $0xc8] sm:$0xff] %vm810, %v765
        %837 = vst.msk [vmem:[#allocation4 + $0xd0] sm:$0xff] %vm810, %v767
        %838 = vst.msk [vmem:[#allocation4 + $0xd8] sm:$0xff] %vm810, %v769
        %839 = vst.msk [vmem:[#allocation4 + $0xe0] sm:$0xff] %vm810, %v771
        %840 = vst.msk [vmem:[#allocation4 + $0xe8] sm:$0xff] %vm810, %v773
        %841 = vst.msk [vmem:[#allocation4 + $0xf0] sm:$0xff] %vm810, %v775
        %842 = vst.msk [vmem:[#allocation4 + $0xf8] sm:$0xff] %vm810, %v777
        %v843 = vld [vmem:[%s2] sm:$0x1]
        %v845 = vsel %vm440, %v843, 0
        %847 = vmatprep.subr.bf16.mxu0 0
        %848 = vmatpush1.bf16.xpose.msra.mxu0 %v442
        %849 = vmatprep.subr.bf16.mxu0 0
        %850 = vmatpush1.bf16.xpose.msra.mxu0 %v445
        %851 = vmatprep.subr.bf16.mxu0 0
        %852 = vmatpush1.bf16.xpose.msra.mxu0 %v448
        %853 = vmatprep.subr.bf16.mxu0 0
        %854 = vmatpush1.bf16.xpose.msra.mxu0 %v451
        %855 = vmatprep.subr.bf16.mxu0 0
        %856 = vmatpush1.bf16.xpose.msra.mxu0 %v454
        %857 = vmatprep.subr.bf16.mxu0 0
        %858 = vmatpush1.bf16.xpose.msra.mxu0 %v457
        %859 = vmatprep.subr.bf16.mxu0 0
        %860 = vmatpush1.bf16.xpose.msra.mxu0 %v460
        %861 = vmatprep.subr.bf16.mxu0 0
        %862 = vmatpush1.bf16.xpose.msra.mxu0 %v463
        %863 = vmatprep.subr.bf16.mxu0 0
        %864 = vmatpush1.bf16.xpose.msra.mxu0 %v466
        %865 = vmatprep.subr.bf16.mxu0 0
        %866 = vmatpush1.bf16.xpose.msra.mxu0 %v469
        %867 = vmatprep.subr.bf16.mxu0 0
        %868 = vmatpush1.bf16.xpose.msra.mxu0 %v472
        %869 = vmatprep.subr.bf16.mxu0 0
        %870 = vmatpush1.bf16.xpose.msra.mxu0 %v475
        %871 = vmatprep.subr.bf16.mxu0 0
        %872 = vmatpush1.bf16.xpose.msra.mxu0 %v478
        %873 = vmatprep.subr.bf16.mxu0 0
        %874 = vmatpush1.bf16.xpose.msra.mxu0 %v481
        %875 = vmatprep.subr.bf16.mxu0 0
        %876 = vmatpush1.bf16.xpose.msra.mxu0 %v484
        %877 = vmatprep.subr.bf16.mxu0 0
        %878 = vmatpush1.bf16.xpose.msra.mxu0 %v487
        %879 = vmatprep.mubr.bf16.mxu0 0
        %880 = vmatmul.mubr.bf16.gmra.mrb[0].mxu0 %v845
        %v881 = vpop.f32.mrb[0].mxu0
        %v882 = vadd.f32 0.0, %v881
        %v883 = vpop.f32.mrb[0].mxu0
        %v884 = vadd.f32 0.0, %v883
        %v885 = vpop.f32.mrb[0].mxu0
        %v886 = vpop.f32.mrb[0].mxu0
        %887 = vdwg.mxu0
        %v890 = vcombine.low %v882, %v884
        %v892 = vunpack.c.l.s4 1966171168
        %v893 = vunpack.c.0.s8 %v892
        %v894 = vlaneseq
        %v895 = vshrl.u32 %v894, 7
        %v896 = vsub.s32 %v893, %v895
        %v897 = vrot.slane %v890, %v896
        %v899 = vunpack.c.l.s4 1966171168
        %v900 = vunpack.c.0.s8 %v899
        %v901 = vlaneseq
        %v902 = vshrl.u32 %v901, 7
        %v903 = vsub.s32 %v900, %v902
        %v904 = vrot.slane %v897, %v903
        %v906 = vlaneseq
        %vm907 = vcmp.ge.s32.totalorder %v906, 0
        %vm908 = vcmp.lt.s32.totalorder %v906, 256
        %vm909 = vmand %vm907, %vm908
        %910 = vst.msk [vmem:[#allocation3] sm:$0x3] %vm909, %v904
      $region56: #{gat_conv_forward.1} parent=51 // pred_fallthru
        _
      // Predicated region
      $region57: #{gat_conv_forward.1} parent=51 // pred_check
        %p911 = pneg %p306
      $region58: #{gat_conv_forward.1} parent=51 // pred_check_branch
        %913 = sbr.rel (%p911) target = $region60
      $region59: #{gat_conv_forward.1} parent=51 // pred_region
        %s914 = sshra.s32 %s305, 3
        %s915 = sand.u32 %s305, 7
        %s916 = smul.u32 %s914, 2
        %s917 = smul.addr %s916, 4
        %s918 = scalar_lea.vmem %s7, %s917
        %v919 = vld [vmem:[%s918] sm:$0xff]
        %v920 = vld [vmem:[%s918 + $0x8] sm:$0xff]
        %v921 = vld [vmem:[%s918 + $0x10] sm:$0xff]
        %v922 = vld [vmem:[%s918 + $0x18] sm:$0xff]
        %v923 = vld [vmem:[%s918 + $0x20] sm:$0xff]
        %v924 = vld [vmem:[%s918 + $0x28] sm:$0xff]
        %v925 = vld [vmem:[%s918 + $0x30] sm:$0xff]
        %v926 = vld [vmem:[%s918 + $0x38] sm:$0xff]
        %v927 = vld [vmem:[%s918 + $0x40] sm:$0xff]
        %v928 = vld [vmem:[%s918 + $0x48] sm:$0xff]
        %v929 = vld [vmem:[%s918 + $0x50] sm:$0xff]
        %v930 = vld [vmem:[%s918 + $0x58] sm:$0xff]
        %v931 = vld [vmem:[%s918 + $0x60] sm:$0xff]
        %v932 = vld [vmem:[%s918 + $0x68] sm:$0xff]
        %v933 = vld [vmem:[%s918 + $0x70] sm:$0xff]
        %v934 = vld [vmem:[%s918 + $0x78] sm:$0xff]
        %s935 = scalar_lea.vmem [#allocation4], %s305
        %v936 = vld [vmem:[%s935] sm:$0xff]
        %v937 = vld [vmem:[%s935 + $0x8] sm:$0xff]
        %v938 = vld [vmem:[%s935 + $0x10] sm:$0xff]
        %v939 = vld [vmem:[%s935 + $0x18] sm:$0xff]
        %v940 = vld [vmem:[%s935 + $0x20] sm:$0xff]
        %v941 = vld [vmem:[%s935 + $0x28] sm:$0xff]
        %v942 = vld [vmem:[%s935 + $0x30] sm:$0xff]
        %v943 = vld [vmem:[%s935 + $0x38] sm:$0xff]
        %v944 = vld [vmem:[%s935 + $0x40] sm:$0xff]
        %v945 = vld [vmem:[%s935 + $0x48] sm:$0xff]
        %v946 = vld [vmem:[%s935 + $0x50] sm:$0xff]
        %v947 = vld [vmem:[%s935 + $0x58] sm:$0xff]
        %v948 = vld [vmem:[%s935 + $0x60] sm:$0xff]
        %v949 = vld [vmem:[%s935 + $0x68] sm:$0xff]
        %v950 = vld [vmem:[%s935 + $0x70] sm:$0xff]
        %v951 = vld [vmem:[%s935 + $0x78] sm:$0xff]
        %v952 = vld [vmem:[#allocation3] sm:$0x3]
        %954 = vset.pattern.permute.xlu0 0
        %955 = vperm.xlu0 %954, %v936
        %v956 = vpop.permute.xlu0 %955
        %959 = vset.pattern.permute.xlu0 0
        %960 = vperm.xlu0 %959, %v937
        %v961 = vpop.permute.xlu0 %960
        %964 = vset.pattern.permute.xlu0 0
        %965 = vperm.xlu0 %964, %v938
        %v966 = vpop.permute.xlu0 %965
        %969 = vset.pattern.permute.xlu0 0
        %970 = vperm.xlu0 %969, %v939
        %v971 = vpop.permute.xlu0 %970
        %974 = vset.pattern.permute.xlu0 0
        %975 = vperm.xlu0 %974, %v940
        %v976 = vpop.permute.xlu0 %975
        %979 = vset.pattern.permute.xlu0 0
        %980 = vperm.xlu0 %979, %v941
        %v981 = vpop.permute.xlu0 %980
        %984 = vset.pattern.permute.xlu0 0
        %985 = vperm.xlu0 %984, %v942
        %v986 = vpop.permute.xlu0 %985
        %989 = vset.pattern.permute.xlu0 0
        %990 = vperm.xlu0 %989, %v943
        %v991 = vpop.permute.xlu0 %990
        %994 = vset.pattern.permute.xlu0 0
        %995 = vperm.xlu0 %994, %v944
        %v996 = vpop.permute.xlu0 %995
        %999 = vset.pattern.permute.xlu0 0
        %1000 = vperm.xlu0 %999, %v945
        %v1001 = vpop.permute.xlu0 %1000
        %1004 = vset.pattern.permute.xlu0 0
        %1005 = vperm.xlu0 %1004, %v946
        %v1006 = vpop.permute.xlu0 %1005
        %1009 = vset.pattern.permute.xlu0 0
        %1010 = vperm.xlu0 %1009, %v947
        %v1011 = vpop.permute.xlu0 %1010
        %1014 = vset.pattern.permute.xlu0 0
        %1015 = vperm.xlu0 %1014, %v948
        %v1016 = vpop.permute.xlu0 %1015
        %1019 = vset.pattern.permute.xlu0 0
        %1020 = vperm.xlu0 %1019, %v949
        %v1021 = vpop.permute.xlu0 %1020
        %1024 = vset.pattern.permute.xlu0 0
        %1025 = vperm.xlu0 %1024, %v950
        %v1026 = vpop.permute.xlu0 %1025
        %1029 = vset.pattern.permute.xlu0 0
        %1030 = vperm.xlu0 %1029, %v951
        %v1031 = vpop.permute.xlu0 %1030
        %v1034 = vlaneseq
        %v1035 = vshrl.u32 %v1034, 7
        %v1036 = vsub.s32 0, %v1035
        %v1037 = vrot.slane %v952, %v1036
        %v1038 = vlaneseq
        %v1039 = vshrl.u32 %v1038, 7
        %v1040 = vsub.s32 1, %v1039
        %v1041 = vrot.slane %v952, %v1040
        %v1044 = vadd.f32 %v956, %v1037
        %v1045 = vadd.f32 %v956, %v1041
        %v1046 = vadd.f32 %v961, %v1037
        %v1047 = vadd.f32 %v961, %v1041
        %v1048 = vadd.f32 %v966, %v1037
        %v1049 = vadd.f32 %v966, %v1041
        %v1050 = vadd.f32 %v971, %v1037
        %v1051 = vadd.f32 %v971, %v1041
        %v1052 = vadd.f32 %v976, %v1037
        %v1053 = vadd.f32 %v976, %v1041
        %v1054 = vadd.f32 %v981, %v1037
        %v1055 = vadd.f32 %v981, %v1041
        %v1056 = vadd.f32 %v986, %v1037
        %v1057 = vadd.f32 %v986, %v1041
        %v1058 = vadd.f32 %v991, %v1037
        %v1059 = vadd.f32 %v991, %v1041
        %v1060 = vadd.f32 %v996, %v1037
        %v1061 = vadd.f32 %v996, %v1041
        %v1062 = vadd.f32 %v1001, %v1037
        %v1063 = vadd.f32 %v1001, %v1041
        %v1064 = vadd.f32 %v1006, %v1037
        %v1065 = vadd.f32 %v1006, %v1041
        %v1066 = vadd.f32 %v1011, %v1037
        %v1067 = vadd.f32 %v1011, %v1041
        %v1068 = vadd.f32 %v1016, %v1037
        %v1069 = vadd.f32 %v1016, %v1041
        %v1070 = vadd.f32 %v1021, %v1037
        %v1071 = vadd.f32 %v1021, %v1041
        %v1072 = vadd.f32 %v1026, %v1037
        %v1073 = vadd.f32 %v1026, %v1041
        %v1074 = vadd.f32 %v1031, %v1037
        %v1075 = vadd.f32 %v1031, %v1041
        %v1076 = vmul.f32 %v1044, 0.2
        %v1077 = vmul.f32 %v1045, 0.2
        %v1078 = vmul.f32 %v1046, 0.2
        %v1079 = vmul.f32 %v1047, 0.2
        %v1080 = vmul.f32 %v1048, 0.2
        %v1081 = vmul.f32 %v1049, 0.2
        %v1082 = vmul.f32 %v1050, 0.2
        %v1083 = vmul.f32 %v1051, 0.2
        %v1084 = vmul.f32 %v1052, 0.2
        %v1085 = vmul.f32 %v1053, 0.2
        %v1086 = vmul.f32 %v1054, 0.2
        %v1087 = vmul.f32 %v1055, 0.2
        %v1088 = vmul.f32 %v1056, 0.2
        %v1089 = vmul.f32 %v1057, 0.2
        %v1090 = vmul.f32 %v1058, 0.2
        %v1091 = vmul.f32 %v1059, 0.2
        %v1092 = vmul.f32 %v1060, 0.2
        %v1093 = vmul.f32 %v1061, 0.2
        %v1094 = vmul.f32 %v1062, 0.2
        %v1095 = vmul.f32 %v1063, 0.2
        %v1096 = vmul.f32 %v1064, 0.2
        %v1097 = vmul.f32 %v1065, 0.2
        %v1098 = vmul.f32 %v1066, 0.2
        %v1099 = vmul.f32 %v1067, 0.2
        %v1100 = vmul.f32 %v1068, 0.2
        %v1101 = vmul.f32 %v1069, 0.2
        %v1102 = vmul.f32 %v1070, 0.2
        %v1103 = vmul.f32 %v1071, 0.2
        %v1104 = vmul.f32 %v1072, 0.2
        %v1105 = vmul.f32 %v1073, 0.2
        %v1106 = vmul.f32 %v1074, 0.2
        %v1107 = vmul.f32 %v1075, 0.2
        %v1108 = vmax.f32 %v1044, %v1076
        %v1109 = vmax.f32 %v1045, %v1077
        %v1110 = vmax.f32 %v1046, %v1078
        %v1111 = vmax.f32 %v1047, %v1079
        %v1112 = vmax.f32 %v1048, %v1080
        %v1113 = vmax.f32 %v1049, %v1081
        %v1114 = vmax.f32 %v1050, %v1082
        %v1115 = vmax.f32 %v1051, %v1083
        %v1116 = vmax.f32 %v1052, %v1084
        %v1117 = vmax.f32 %v1053, %v1085
        %v1118 = vmax.f32 %v1054, %v1086
        %v1119 = vmax.f32 %v1055, %v1087
        %v1120 = vmax.f32 %v1056, %v1088
        %v1121 = vmax.f32 %v1057, %v1089
        %v1122 = vmax.f32 %v1058, %v1090
        %v1123 = vmax.f32 %v1059, %v1091
        %v1124 = vmax.f32 %v1060, %v1092
        %v1125 = vmax.f32 %v1061, %v1093
        %v1126 = vmax.f32 %v1062, %v1094
        %v1127 = vmax.f32 %v1063, %v1095
        %v1128 = vmax.f32 %v1064, %v1096
        %v1129 = vmax.f32 %v1065, %v1097
        %v1130 = vmax.f32 %v1066, %v1098
        %v1131 = vmax.f32 %v1067, %v1099
        %v1132 = vmax.f32 %v1068, %v1100
        %v1133 = vmax.f32 %v1069, %v1101
        %v1134 = vmax.f32 %v1070, %v1102
        %v1135 = vmax.f32 %v1071, %v1103
        %v1136 = vmax.f32 %v1072, %v1104
        %v1137 = vmax.f32 %v1073, %v1105
        %v1138 = vmax.f32 %v1074, %v1106
        %v1139 = vmax.f32 %v1075, %v1107
        %v1140 = vunpack.c.l.bf16 %v919
        %v1141 = vunpack.c.h.bf16 %v919
        %v1142 = vunpack.c.l.bf16 %v920
        %v1143 = vunpack.c.h.bf16 %v920
        %v1144 = vunpack.c.l.bf16 %v921
        %v1145 = vunpack.c.h.bf16 %v921
        %v1146 = vunpack.c.l.bf16 %v922
        %v1147 = vunpack.c.h.bf16 %v922
        %v1148 = vunpack.c.l.bf16 %v923
        %v1149 = vunpack.c.h.bf16 %v923
        %v1150 = vunpack.c.l.bf16 %v924
        %v1151 = vunpack.c.h.bf16 %v924
        %v1152 = vunpack.c.l.bf16 %v925
        %v1153 = vunpack.c.h.bf16 %v925
        %v1154 = vunpack.c.l.bf16 %v926
        %v1155 = vunpack.c.h.bf16 %v926
        %v1156 = vunpack.c.l.bf16 %v927
        %v1157 = vunpack.c.h.bf16 %v927
        %v1158 = vunpack.c.l.bf16 %v928
        %v1159 = vunpack.c.h.bf16 %v928
        %v1160 = vunpack.c.l.bf16 %v929
        %v1161 = vunpack.c.h.bf16 %v929
        %v1162 = vunpack.c.l.bf16 %v930
        %v1163 = vunpack.c.h.bf16 %v930
        %v1164 = vunpack.c.l.bf16 %v931
        %v1165 = vunpack.c.h.bf16 %v931
        %v1166 = vunpack.c.l.bf16 %v932
        %v1167 = vunpack.c.h.bf16 %v932
        %v1168 = vunpack.c.l.bf16 %v933
        %v1169 = vunpack.c.h.bf16 %v933
        %v1170 = vunpack.c.l.bf16 %v934
        %v1171 = vunpack.c.h.bf16 %v934
        %v1172 = vadd.f32 %v1108, %v1140
        %v1173 = vadd.f32 %v1109, %v1141
        %v1174 = vadd.f32 %v1110, %v1142
        %v1175 = vadd.f32 %v1111, %v1143
        %v1176 = vadd.f32 %v1112, %v1144
        %v1177 = vadd.f32 %v1113, %v1145
        %v1178 = vadd.f32 %v1114, %v1146
        %v1179 = vadd.f32 %v1115, %v1147
        %v1180 = vadd.f32 %v1116, %v1148
        %v1181 = vadd.f32 %v1117, %v1149
        %v1182 = vadd.f32 %v1118, %v1150
        %v1183 = vadd.f32 %v1119, %v1151
        %v1184 = vadd.f32 %v1120, %v1152
        %v1185 = vadd.f32 %v1121, %v1153
        %v1186 = vadd.f32 %v1122, %v1154
        %v1187 = vadd.f32 %v1123, %v1155
        %v1188 = vadd.f32 %v1124, %v1156
        %v1189 = vadd.f32 %v1125, %v1157
        %v1190 = vadd.f32 %v1126, %v1158
        %v1191 = vadd.f32 %v1127, %v1159
        %v1192 = vadd.f32 %v1128, %v1160
        %v1193 = vadd.f32 %v1129, %v1161
        %v1194 = vadd.f32 %v1130, %v1162
        %v1195 = vadd.f32 %v1131, %v1163
        %v1196 = vadd.f32 %v1132, %v1164
        %v1197 = vadd.f32 %v1133, %v1165
        %v1198 = vadd.f32 %v1134, %v1166
        %v1199 = vadd.f32 %v1135, %v1167
        %v1200 = vadd.f32 %v1136, %v1168
        %v1201 = vadd.f32 %v1137, %v1169
        %v1202 = vadd.f32 %v1138, %v1170
        %v1203 = vadd.f32 %v1139, %v1171
        %v1204 = vmax.f32 %v1172, %v1173
        %1205 = vmax.xlane.f32.xlu0 %v1204
        %v1206 = vpop.xlane.xlu0 %1205
        %v1207 = vmax.f32 %v1174, %v1175
        %1208 = vmax.xlane.f32.xlu0 %v1207
        %v1209 = vpop.xlane.xlu0 %1208
        %v1210 = vmax.f32 %v1176, %v1177
        %1211 = vmax.xlane.f32.xlu0 %v1210
        %v1212 = vpop.xlane.xlu0 %1211
        %v1213 = vmax.f32 %v1178, %v1179
        %1214 = vmax.xlane.f32.xlu0 %v1213
        %v1215 = vpop.xlane.xlu0 %1214
        %v1216 = vmax.f32 %v1180, %v1181
        %1217 = vmax.xlane.f32.xlu0 %v1216
        %v1218 = vpop.xlane.xlu0 %1217
        %v1219 = vmax.f32 %v1182, %v1183
        %1220 = vmax.xlane.f32.xlu0 %v1219
        %v1221 = vpop.xlane.xlu0 %1220
        %v1222 = vmax.f32 %v1184, %v1185
        %1223 = vmax.xlane.f32.xlu0 %v1222
        %v1224 = vpop.xlane.xlu0 %1223
        %v1225 = vmax.f32 %v1186, %v1187
        %1226 = vmax.xlane.f32.xlu0 %v1225
        %v1227 = vpop.xlane.xlu0 %1226
        %v1228 = vmax.f32 %v1188, %v1189
        %1229 = vmax.xlane.f32.xlu0 %v1228
        %v1230 = vpop.xlane.xlu0 %1229
        %v1231 = vmax.f32 %v1190, %v1191
        %1232 = vmax.xlane.f32.xlu0 %v1231
        %v1233 = vpop.xlane.xlu0 %1232
        %v1234 = vmax.f32 %v1192, %v1193
        %1235 = vmax.xlane.f32.xlu0 %v1234
        %v1236 = vpop.xlane.xlu0 %1235
        %v1237 = vmax.f32 %v1194, %v1195
        %1238 = vmax.xlane.f32.xlu0 %v1237
        %v1239 = vpop.xlane.xlu0 %1238
        %v1240 = vmax.f32 %v1196, %v1197
        %1241 = vmax.xlane.f32.xlu0 %v1240
        %v1242 = vpop.xlane.xlu0 %1241
        %v1243 = vmax.f32 %v1198, %v1199
        %1244 = vmax.xlane.f32.xlu0 %v1243
        %v1245 = vpop.xlane.xlu0 %1244
        %v1246 = vmax.f32 %v1200, %v1201
        %1247 = vmax.xlane.f32.xlu0 %v1246
        %v1248 = vpop.xlane.xlu0 %1247
        %v1249 = vmax.f32 %v1202, %v1203
        %1250 = vmax.xlane.f32.xlu0 %v1249
        %v1251 = vpop.xlane.xlu0 %1250
        %v1252 = vmax.f32 %v1206, -1e+20
        %v1253 = vmax.f32 %v1209, -1e+20
        %v1254 = vmax.f32 %v1212, -1e+20
        %v1255 = vmax.f32 %v1215, -1e+20
        %v1256 = vmax.f32 %v1218, -1e+20
        %v1257 = vmax.f32 %v1221, -1e+20
        %v1258 = vmax.f32 %v1224, -1e+20
        %v1259 = vmax.f32 %v1227, -1e+20
        %v1260 = vmax.f32 %v1230, -1e+20
        %v1261 = vmax.f32 %v1233, -1e+20
        %v1262 = vmax.f32 %v1236, -1e+20
        %v1263 = vmax.f32 %v1239, -1e+20
        %v1264 = vmax.f32 %v1242, -1e+20
        %v1265 = vmax.f32 %v1245, -1e+20
        %v1266 = vmax.f32 %v1248, -1e+20
        %v1267 = vmax.f32 %v1251, -1e+20
        %v1268 = vsub.f32 %v1172, %v1252
        %v1269 = vsub.f32 %v1173, %v1252
        %v1270 = vsub.f32 %v1174, %v1253
        %v1271 = vsub.f32 %v1175, %v1253
        %v1272 = vsub.f32 %v1176, %v1254
        %v1273 = vsub.f32 %v1177, %v1254
        %v1274 = vsub.f32 %v1178, %v1255
        %v1275 = vsub.f32 %v1179, %v1255
        %v1276 = vsub.f32 %v1180, %v1256
        %v1277 = vsub.f32 %v1181, %v1256
        %v1278 = vsub.f32 %v1182, %v1257
        %v1279 = vsub.f32 %v1183, %v1257
        %v1280 = vsub.f32 %v1184, %v1258
        %v1281 = vsub.f32 %v1185, %v1258
        %v1282 = vsub.f32 %v1186, %v1259
        %v1283 = vsub.f32 %v1187, %v1259
        %v1284 = vsub.f32 %v1188, %v1260
        %v1285 = vsub.f32 %v1189, %v1260
        %v1286 = vsub.f32 %v1190, %v1261
        %v1287 = vsub.f32 %v1191, %v1261
        %v1288 = vsub.f32 %v1192, %v1262
        %v1289 = vsub.f32 %v1193, %v1262
        %v1290 = vsub.f32 %v1194, %v1263
        %v1291 = vsub.f32 %v1195, %v1263
        %v1292 = vsub.f32 %v1196, %v1264
        %v1293 = vsub.f32 %v1197, %v1264
        %v1294 = vsub.f32 %v1198, %v1265
        %v1295 = vsub.f32 %v1199, %v1265
        %v1296 = vsub.f32 %v1200, %v1266
        %v1297 = vsub.f32 %v1201, %v1266
        %v1298 = vsub.f32 %v1202, %v1267
        %v1299 = vsub.f32 %v1203, %v1267
        %v1300 = vmul.f32 %v1268, 1.442695
        %v1301 = vpow.pop %v1300
        %v1302 = vmul.f32 %v1269, 1.442695
        %v1303 = vpow.pop %v1302
        %v1304 = vmul.f32 %v1270, 1.442695
        %v1305 = vpow.pop %v1304
        %v1306 = vmul.f32 %v1271, 1.442695
        %v1307 = vpow.pop %v1306
        %v1308 = vmul.f32 %v1272, 1.442695
        %v1309 = vpow.pop %v1308
        %v1310 = vmul.f32 %v1273, 1.442695
        %v1311 = vpow.pop %v1310
        %v1312 = vmul.f32 %v1274, 1.442695
        %v1313 = vpow.pop %v1312
        %v1314 = vmul.f32 %v1275, 1.442695
        %v1315 = vpow.pop %v1314
        %v1316 = vmul.f32 %v1276, 1.442695
        %v1317 = vpow.pop %v1316
        %v1318 = vmul.f32 %v1277, 1.442695
        %v1319 = vpow.pop %v1318
        %v1320 = vmul.f32 %v1278, 1.442695
        %v1321 = vpow.pop %v1320
        %v1322 = vmul.f32 %v1279, 1.442695
        %v1323 = vpow.pop %v1322
        %v1324 = vmul.f32 %v1280, 1.442695
        %v1325 = vpow.pop %v1324
        %v1326 = vmul.f32 %v1281, 1.442695
        %v1327 = vpow.pop %v1326
        %v1328 = vmul.f32 %v1282, 1.442695
        %v1329 = vpow.pop %v1328
        %v1330 = vmul.f32 %v1283, 1.442695
        %v1331 = vpow.pop %v1330
        %v1332 = vmul.f32 %v1284, 1.442695
        %v1333 = vpow.pop %v1332
        %v1334 = vmul.f32 %v1285, 1.442695
        %v1335 = vpow.pop %v1334
        %v1336 = vmul.f32 %v1286, 1.442695
        %v1337 = vpow.pop %v1336
        %v1338 = vmul.f32 %v1287, 1.442695
        %v1339 = vpow.pop %v1338
        %v1340 = vmul.f32 %v1288, 1.442695
        %v1341 = vpow.pop %v1340
        %v1342 = vmul.f32 %v1289, 1.442695
        %v1343 = vpow.pop %v1342
        %v1344 = vmul.f32 %v1290, 1.442695
        %v1345 = vpow.pop %v1344
        %v1346 = vmul.f32 %v1291, 1.442695
        %v1347 = vpow.pop %v1346
        %v1348 = vmul.f32 %v1292, 1.442695
        %v1349 = vpow.pop %v1348
        %v1350 = vmul.f32 %v1293, 1.442695
        %v1351 = vpow.pop %v1350
        %v1352 = vmul.f32 %v1294, 1.442695
        %v1353 = vpow.pop %v1352
        %v1354 = vmul.f32 %v1295, 1.442695
        %v1355 = vpow.pop %v1354
        %v1356 = vmul.f32 %v1296, 1.442695
        %v1357 = vpow.pop %v1356
        %v1358 = vmul.f32 %v1297, 1.442695
        %v1359 = vpow.pop %v1358
        %v1360 = vmul.f32 %v1298, 1.442695
        %v1361 = vpow.pop %v1360
        %v1362 = vmul.f32 %v1299, 1.442695
        %v1363 = vpow.pop %v1362
        %v1364 = vadd.f32 %v1301, %v1303
        %1365 = vadd.xlane.f32.xlu0 %v1364
        %v1366 = vpop.xlane.xlu0 %1365
        %v1367 = vadd.f32 %v1305, %v1307
        %1368 = vadd.xlane.f32.xlu0 %v1367
        %v1369 = vpop.xlane.xlu0 %1368
        %v1370 = vadd.f32 %v1309, %v1311
        %1371 = vadd.xlane.f32.xlu0 %v1370
        %v1372 = vpop.xlane.xlu0 %1371
        %v1373 = vadd.f32 %v1313, %v1315
        %1374 = vadd.xlane.f32.xlu0 %v1373
        %v1375 = vpop.xlane.xlu0 %1374
        %v1376 = vadd.f32 %v1317, %v1319
        %1377 = vadd.xlane.f32.xlu0 %v1376
        %v1378 = vpop.xlane.xlu0 %1377
        %v1379 = vadd.f32 %v1321, %v1323
        %1380 = vadd.xlane.f32.xlu0 %v1379
        %v1381 = vpop.xlane.xlu0 %1380
        %v1382 = vadd.f32 %v1325, %v1327
        %1383 = vadd.xlane.f32.xlu0 %v1382
        %v1384 = vpop.xlane.xlu0 %1383
        %v1385 = vadd.f32 %v1329, %v1331
        %1386 = vadd.xlane.f32.xlu0 %v1385
        %v1387 = vpop.xlane.xlu0 %1386
        %v1388 = vadd.f32 %v1333, %v1335
        %1389 = vadd.xlane.f32.xlu0 %v1388
        %v1390 = vpop.xlane.xlu0 %1389
        %v1391 = vadd.f32 %v1337, %v1339
        %1392 = vadd.xlane.f32.xlu0 %v1391
        %v1393 = vpop.xlane.xlu0 %1392
        %v1394 = vadd.f32 %v1341, %v1343
        %1395 = vadd.xlane.f32.xlu0 %v1394
        %v1396 = vpop.xlane.xlu0 %1395
        %v1397 = vadd.f32 %v1345, %v1347
        %1398 = vadd.xlane.f32.xlu0 %v1397
        %v1399 = vpop.xlane.xlu0 %1398
        %v1400 = vadd.f32 %v1349, %v1351
        %1401 = vadd.xlane.f32.xlu0 %v1400
        %v1402 = vpop.xlane.xlu0 %1401
        %v1403 = vadd.f32 %v1353, %v1355
        %1404 = vadd.xlane.f32.xlu0 %v1403
        %v1405 = vpop.xlane.xlu0 %1404
        %v1406 = vadd.f32 %v1357, %v1359
        %1407 = vadd.xlane.f32.xlu0 %v1406
        %v1408 = vpop.xlane.xlu0 %1407
        %v1409 = vadd.f32 %v1361, %v1363
        %1410 = vadd.xlane.f32.xlu0 %v1409
        %v1411 = vpop.xlane.xlu0 %1410
        %v1412 = vmax.f32 %v1366, 1e-16
        %v1413 = vmax.f32 %v1369, 1e-16
        %v1414 = vmax.f32 %v1372, 1e-16
        %v1415 = vmax.f32 %v1375, 1e-16
        %v1416 = vmax.f32 %v1378, 1e-16
        %v1417 = vmax.f32 %v1381, 1e-16
        %v1418 = vmax.f32 %v1384, 1e-16
        %v1419 = vmax.f32 %v1387, 1e-16
        %v1420 = vmax.f32 %v1390, 1e-16
        %v1421 = vmax.f32 %v1393, 1e-16
        %v1422 = vmax.f32 %v1396, 1e-16
        %v1423 = vmax.f32 %v1399, 1e-16
        %v1424 = vmax.f32 %v1402, 1e-16
        %v1425 = vmax.f32 %v1405, 1e-16
        %v1426 = vmax.f32 %v1408, 1e-16
        %v1427 = vmax.f32 %v1411, 1e-16
        %v1428 = vrcp.pop %v1412
        %v1429 = vrcp.pop %v1413
        %v1430 = vrcp.pop %v1414
        %v1431 = vrcp.pop %v1415
        %v1432 = vrcp.pop %v1416
        %v1433 = vrcp.pop %v1417
        %v1434 = vrcp.pop %v1418
        %v1435 = vrcp.pop %v1419
        %v1436 = vrcp.pop %v1420
        %v1437 = vrcp.pop %v1421
        %v1438 = vrcp.pop %v1422
        %v1439 = vrcp.pop %v1423
        %v1440 = vrcp.pop %v1424
        %v1441 = vrcp.pop %v1425
        %v1442 = vrcp.pop %v1426
        %v1443 = vrcp.pop %v1427
        %v1444 = vpack.c.bf16 %v1305, %v1301
        %v1445 = vpack.c.bf16 %v1307, %v1303
        %v1446 = vpack.c.bf16 %v1313, %v1309
        %v1447 = vpack.c.bf16 %v1315, %v1311
        %v1448 = vpack.c.bf16 %v1321, %v1317
        %v1449 = vpack.c.bf16 %v1323, %v1319
        %v1450 = vpack.c.bf16 %v1329, %v1325
        %v1451 = vpack.c.bf16 %v1331, %v1327
        %v1452 = vpack.c.bf16 %v1337, %v1333
        %v1453 = vpack.c.bf16 %v1339, %v1335
        %v1454 = vpack.c.bf16 %v1345, %v1341
        %v1455 = vpack.c.bf16 %v1347, %v1343
        %v1456 = vpack.c.bf16 %v1353, %v1349
        %v1457 = vpack.c.bf16 %v1355, %v1351
        %v1458 = vpack.c.bf16 %v1361, %v1357
        %v1459 = vpack.c.bf16 %v1363, %v1359
        %v1460 = vld [vmem:[#allocation2] sm:$0xff]
        %v1461 = vld [vmem:[#allocation2 + $0x8] sm:$0xff]
        %v1462 = vld [vmem:[#allocation2 + $0x10] sm:$0xff]
        %v1463 = vld [vmem:[#allocation2 + $0x18] sm:$0xff]
        %v1464 = vld [vmem:[#allocation2 + $0x20] sm:$0xff]
        %v1465 = vld [vmem:[#allocation2 + $0x28] sm:$0xff]
        %v1466 = vld [vmem:[#allocation2 + $0x30] sm:$0xff]
        %v1467 = vld [vmem:[#allocation2 + $0x38] sm:$0xff]
        %v1468 = vld [vmem:[#allocation2 + $0x40] sm:$0xff]
        %v1469 = vld [vmem:[#allocation2 + $0x48] sm:$0xff]
        %v1470 = vld [vmem:[#allocation2 + $0x50] sm:$0xff]
        %v1471 = vld [vmem:[#allocation2 + $0x58] sm:$0xff]
        %v1472 = vld [vmem:[#allocation2 + $0x60] sm:$0xff]
        %v1473 = vld [vmem:[#allocation2 + $0x68] sm:$0xff]
        %v1474 = vld [vmem:[#allocation2 + $0x70] sm:$0xff]
        %v1475 = vld [vmem:[#allocation2 + $0x78] sm:$0xff]
        %1476 = vmatprep.subr.bf16.mxu0 0
        %1477 = vmatpush1.bf16.msra.mxu0 %v1460
        %1478 = vmatprep.subr.bf16.mxu0 0
        %1479 = vmatpush1.bf16.msra.mxu0 %v1461
        %1480 = vmatprep.subr.bf16.mxu0 0
        %1481 = vmatpush1.bf16.msra.mxu0 %v1462
        %1482 = vmatprep.subr.bf16.mxu0 0
        %1483 = vmatpush1.bf16.msra.mxu0 %v1463
        %1484 = vmatprep.subr.bf16.mxu0 0
        %1485 = vmatpush1.bf16.msra.mxu0 %v1464
        %1486 = vmatprep.subr.bf16.mxu0 0
        %1487 = vmatpush1.bf16.msra.mxu0 %v1465
        %1488 = vmatprep.subr.bf16.mxu0 0
        %1489 = vmatpush1.bf16.msra.mxu0 %v1466
        %1490 = vmatprep.subr.bf16.mxu0 0
        %1491 = vmatpush1.bf16.msra.mxu0 %v1467
        %1492 = vmatprep.subr.bf16.mxu0 0
        %1493 = vmatpush1.bf16.msra.mxu0 %v1468
        %1494 = vmatprep.subr.bf16.mxu0 0
        %1495 = vmatpush1.bf16.msra.mxu0 %v1469
        %1496 = vmatprep.subr.bf16.mxu0 0
        %1497 = vmatpush1.bf16.msra.mxu0 %v1470
        %1498 = vmatprep.subr.bf16.mxu0 0
        %1499 = vmatpush1.bf16.msra.mxu0 %v1471
        %1500 = vmatprep.subr.bf16.mxu0 0
        %1501 = vmatpush1.bf16.msra.mxu0 %v1472
        %1502 = vmatprep.subr.bf16.mxu0 0
        %1503 = vmatpush1.bf16.msra.mxu0 %v1473
        %1504 = vmatprep.subr.bf16.mxu0 0
        %1505 = vmatpush1.bf16.msra.mxu0 %v1474
        %1506 = vmatprep.subr.bf16.mxu0 0
        %1507 = vmatpush1.bf16.msra.mxu0 %v1475
        %1508 = vmatprep.mubr.bf16.mxu0 %v1445
        %1509 = vmatmul.mubr.bf16.gmra.mrb[0].mxu0 %v1444
        %v1510 = vpop.f32.mrb[0].mxu0
        %v1511 = vadd.f32 0.0, %v1510
        %v1512 = vpop.f32.mrb[0].mxu0
        %v1513 = vpop.f32.mrb[0].mxu0
        %v1514 = vadd.f32 0.0, %v1513
        %v1515 = vpop.f32.mrb[0].mxu0
        %1516 = vmatprep.mubr.bf16.mxu0 %v1447
        %1517 = vmatmul.mubr.bf16.gmra.mrb[0].mxu0 %v1446
        %v1518 = vpop.f32.mrb[0].mxu0
        %v1519 = vadd.f32 0.0, %v1518
        %v1520 = vpop.f32.mrb[0].mxu0
        %v1521 = vpop.f32.mrb[0].mxu0
        %v1522 = vadd.f32 0.0, %v1521
        %v1523 = vpop.f32.mrb[0].mxu0
        %1524 = vmatprep.mubr.bf16.mxu0 %v1449
        %1525 = vmatmul.mubr.bf16.gmra.mrb[0].mxu0 %v1448
        %v1526 = vpop.f32.mrb[0].mxu0
        %v1527 = vadd.f32 0.0, %v1526
        %v1528 = vpop.f32.mrb[0].mxu0
        %v1529 = vpop.f32.mrb[0].mxu0
        %v1530 = vadd.f32 0.0, %v1529
        %v1531 = vpop.f32.mrb[0].mxu0
        %1532 = vmatprep.mubr.bf16.mxu0 %v1451
        %1533 = vmatmul.mubr.bf16.gmra.mrb[0].mxu0 %v1450
        %v1534 = vpop.f32.mrb[0].mxu0
        %v1535 = vadd.f32 0.0, %v1534
        %v1536 = vpop.f32.mrb[0].mxu0
        %v1537 = vpop.f32.mrb[0].mxu0
        %v1538 = vadd.f32 0.0, %v1537
        %v1539 = vpop.f32.mrb[0].mxu0
        %1540 = vmatprep.mubr.bf16.mxu0 %v1453
        %1541 = vmatmul.mubr.bf16.gmra.mrb[0].mxu0 %v1452
        %v1542 = vpop.f32.mrb[0].mxu0
        %v1543 = vadd.f32 0.0, %v1542
        %v1544 = vpop.f32.mrb[0].mxu0
        %v1545 = vpop.f32.mrb[0].mxu0
        %v1546 = vadd.f32 0.0, %v1545
        %v1547 = vpop.f32.mrb[0].mxu0
        %1548 = vmatprep.mubr.bf16.mxu0 %v1455
        %1549 = vmatmul.mubr.bf16.gmra.mrb[0].mxu0 %v1454
        %v1550 = vpop.f32.mrb[0].mxu0
        %v1551 = vadd.f32 0.0, %v1550
        %v1552 = vpop.f32.mrb[0].mxu0
        %v1553 = vpop.f32.mrb[0].mxu0
        %v1554 = vadd.f32 0.0, %v1553
        %v1555 = vpop.f32.mrb[0].mxu0
        %1556 = vmatprep.mubr.bf16.mxu0 %v1457
        %1557 = vmatmul.mubr.bf16.gmra.mrb[0].mxu0 %v1456
        %v1558 = vpop.f32.mrb[0].mxu0
        %v1559 = vadd.f32 0.0, %v1558
        %v1560 = vpop.f32.mrb[0].mxu0
        %v1561 = vpop.f32.mrb[0].mxu0
        %v1562 = vadd.f32 0.0, %v1561
        %v1563 = vpop.f32.mrb[0].mxu0
        %1564 = vmatprep.mubr.bf16.mxu0 %v1459
        %1565 = vmatmul.mubr.bf16.gmra.mrb[0].mxu0 %v1458
        %v1566 = vpop.f32.mrb[0].mxu0
        %v1567 = vadd.f32 0.0, %v1566
        %v1568 = vpop.f32.mrb[0].mxu0
        %v1569 = vpop.f32.mrb[0].mxu0
        %v1570 = vadd.f32 0.0, %v1569
        %v1571 = vpop.f32.mrb[0].mxu0
        %1572 = vdwg.mxu0
        %v1573 = vmul.f32 %v1511, %v1428
        %v1574 = vmul.f32 %v1514, %v1429
        %v1575 = vmul.f32 %v1519, %v1430
        %v1576 = vmul.f32 %v1522, %v1431
        %v1577 = vmul.f32 %v1527, %v1432
        %v1578 = vmul.f32 %v1530, %v1433
        %v1579 = vmul.f32 %v1535, %v1434
        %v1580 = vmul.f32 %v1538, %v1435
        %v1581 = vmul.f32 %v1543, %v1436
        %v1582 = vmul.f32 %v1546, %v1437
        %v1583 = vmul.f32 %v1551, %v1438
        %v1584 = vmul.f32 %v1554, %v1439
        %v1585 = vmul.f32 %v1559, %v1440
        %v1586 = vmul.f32 %v1562, %v1441
        %v1587 = vmul.f32 %v1567, %v1442
        %v1588 = vmul.f32 %v1570, %v1443
        %v1589 = vld [vmem:[%s3] sm:$0x1]
        %v1591 = vlaneseq
        %v1592 = vshrl.u32 %v1591, 7
        %v1593 = vsub.s32 0, %v1592
        %v1594 = vrot.slane %v1589, %v1593
        %v1596 = vadd.f32 %v1573, %v1594
        %v1597 = vadd.f32 %v1574, %v1594
        %v1598 = vadd.f32 %v1575, %v1594
        %v1599 = vadd.f32 %v1576, %v1594
        %v1600 = vadd.f32 %v1577, %v1594
        %v1601 = vadd.f32 %v1578, %v1594
        %v1602 = vadd.f32 %v1579, %v1594
        %v1603 = vadd.f32 %v1580, %v1594
        %v1604 = vadd.f32 %v1581, %v1594
        %v1605 = vadd.f32 %v1582, %v1594
        %v1606 = vadd.f32 %v1583, %v1594
        %v1607 = vadd.f32 %v1584, %v1594
        %v1608 = vadd.f32 %v1585, %v1594
        %v1609 = vadd.f32 %v1586, %v1594
        %v1610 = vadd.f32 %v1587, %v1594
        %v1611 = vadd.f32 %v1588, %v1594
        %v1612 = vmax.f32 %v1596, 0.0
        %v1613 = vmax.f32 %v1597, 0.0
        %v1614 = vmax.f32 %v1598, 0.0
        %v1615 = vmax.f32 %v1599, 0.0
        %v1616 = vmax.f32 %v1600, 0.0
        %v1617 = vmax.f32 %v1601, 0.0
        %v1618 = vmax.f32 %v1602, 0.0
        %v1619 = vmax.f32 %v1603, 0.0
        %v1620 = vmax.f32 %v1604, 0.0
        %v1621 = vmax.f32 %v1605, 0.0
        %v1622 = vmax.f32 %v1606, 0.0
        %v1623 = vmax.f32 %v1607, 0.0
        %v1624 = vmax.f32 %v1608, 0.0
        %v1625 = vmax.f32 %v1609, 0.0
        %v1626 = vmax.f32 %v1610, 0.0
        %v1627 = vmax.f32 %v1611, 0.0
        %v1628 = vpack.c.bf16 %v1613, %v1612
        %v1629 = vpack.c.bf16 %v1615, %v1614
        %v1630 = vpack.c.bf16 %v1617, %v1616
        %v1631 = vpack.c.bf16 %v1619, %v1618
        %v1632 = vpack.c.bf16 %v1621, %v1620
        %v1633 = vpack.c.bf16 %v1623, %v1622
        %v1634 = vpack.c.bf16 %v1625, %v1624
        %v1635 = vpack.c.bf16 %v1627, %v1626
        %s1636 = sshra.s32 %s305, 4
        %s1637 = sand.u32 %s305, 15
        %s1638 = smul.addr %s1636, 8
        %s1639 = scalar_lea.vmem [#allocation5], %s1638
        %1640 = vst [vmem:[%s1639] sm:$0xff] %v1628
        %1641 = vst [vmem:[%s1639 + $0x8] sm:$0xff] %v1629
        %1642 = vst [vmem:[%s1639 + $0x10] sm:$0xff] %v1630
        %1643 = vst [vmem:[%s1639 + $0x18] sm:$0xff] %v1631
        %1644 = vst [vmem:[%s1639 + $0x20] sm:$0xff] %v1632
        %1645 = vst [vmem:[%s1639 + $0x28] sm:$0xff] %v1633
        %1646 = vst [vmem:[%s1639 + $0x30] sm:$0xff] %v1634
        %1647 = vst [vmem:[%s1639 + $0x38] sm:$0xff] %v1635
      $region60: #{gat_conv_forward.1} parent=51 // pred_fallthru
        _
      %p1648 = scmp.eq.s32.totalorder %s23, 1
      %p1649 = pnand %p1648, %p307
      %p1650 = pneg %p1649
      // Predicated region
      $region61: #{gat_conv_forward.1} parent=51 // pred_check
        _
      $region62: #{gat_conv_forward.1} parent=51 // pred_check_branch
        %1652 = sbr.rel (%p1649) target = $region64
      $region63: #{gat_conv_forward.1} parent=51 // pred_region
        %v1653 = vld [vmem:[#allocation5] sm:$0xff]
        %v1654 = vld [vmem:[#allocation5 + $0x8] sm:$0xff]
        %v1655 = vld [vmem:[#allocation5 + $0x10] sm:$0xff]
        %v1656 = vld [vmem:[#allocation5 + $0x18] sm:$0xff]
        %v1657 = vld [vmem:[#allocation5 + $0x20] sm:$0xff]
        %v1658 = vld [vmem:[#allocation5 + $0x28] sm:$0xff]
        %v1659 = vld [vmem:[#allocation5 + $0x30] sm:$0xff]
        %v1660 = vld [vmem:[#allocation5 + $0x38] sm:$0xff]
        %v1661 = vld [vmem:[#allocation5 + $0x40] sm:$0xff]
        %v1662 = vld [vmem:[#allocation5 + $0x48] sm:$0xff]
        %v1663 = vld [vmem:[#allocation5 + $0x50] sm:$0xff]
        %v1664 = vld [vmem:[#allocation5 + $0x58] sm:$0xff]
        %v1665 = vld [vmem:[#allocation5 + $0x60] sm:$0xff]
        %v1666 = vld [vmem:[#allocation5 + $0x68] sm:$0xff]
        %v1667 = vld [vmem:[#allocation5 + $0x70] sm:$0xff]
        %v1668 = vld [vmem:[#allocation5 + $0x78] sm:$0xff]
        %v1669 = vld [vmem:[%s4] sm:$0xf]
        %v1670 = vld [vmem:[%s4 + $0x4] sm:$0xf]
        %v1671 = vld [vmem:[%s4 + $0x8] sm:$0xf]
        %v1672 = vld [vmem:[%s4 + $0xc] sm:$0xf]
        %v1673 = vld [vmem:[%s4 + $0x10] sm:$0xf]
        %v1674 = vld [vmem:[%s4 + $0x14] sm:$0xf]
        %v1675 = vld [vmem:[%s4 + $0x18] sm:$0xf]
        %v1676 = vld [vmem:[%s4 + $0x1c] sm:$0xf]
        %v1677 = vld [vmem:[%s4 + $0x20] sm:$0xf]
        %v1678 = vld [vmem:[%s4 + $0x24] sm:$0xf]
        %v1679 = vld [vmem:[%s4 + $0x28] sm:$0xf]
        %v1680 = vld [vmem:[%s4 + $0x2c] sm:$0xf]
        %v1681 = vld [vmem:[%s4 + $0x30] sm:$0xf]
        %v1682 = vld [vmem:[%s4 + $0x34] sm:$0xf]
        %v1683 = vld [vmem:[%s4 + $0x38] sm:$0xf]
        %v1684 = vld [vmem:[%s4 + $0x3c] sm:$0xf]
        %v1701 = vunpack.c.l.b16 %v1669
        %v1702 = vunpack.c.l.b16 %v1670
        %v1703 = vunpack.c.l.b16 %v1671
        %v1704 = vunpack.c.l.b16 %v1672
        %v1705 = vunpack.c.l.b16 %v1673
        %v1706 = vunpack.c.l.b16 %v1674
        %v1707 = vunpack.c.l.b16 %v1675
        %v1708 = vunpack.c.l.b16 %v1676
        %v1709 = vunpack.c.l.b16 %v1677
        %v1710 = vunpack.c.l.b16 %v1678
        %v1711 = vunpack.c.l.b16 %v1679
        %v1712 = vunpack.c.l.b16 %v1680
        %v1713 = vunpack.c.l.b16 %v1681
        %v1714 = vunpack.c.l.b16 %v1682
        %v1715 = vunpack.c.l.b16 %v1683
        %v1716 = vunpack.c.l.b16 %v1684
        %v1717 = vpack.c.b16 %v1702, %v1701
        %v1718 = vpack.c.b16 %v1704, %v1703
        %v1719 = vpack.c.b16 %v1706, %v1705
        %v1720 = vpack.c.b16 %v1708, %v1707
        %v1721 = vpack.c.b16 %v1710, %v1709
        %v1722 = vpack.c.b16 %v1712, %v1711
        %v1723 = vpack.c.b16 %v1714, %v1713
        %v1724 = vpack.c.b16 %v1716, %v1715
        %1733 = vmatprep.subr.bf16.mxu0 0
        %1734 = vmatpush1.bf16.msra.mxu0 %v1717
        %1735 = vmatprep.subr.bf16.mxu0 0
        %1736 = vmatpush1.bf16.msra.mxu0 %v1718
        %1737 = vmatprep.subr.bf16.mxu0 0
        %1738 = vmatpush1.bf16.msra.mxu0 %v1719
        %1739 = vmatprep.subr.bf16.mxu0 0
        %1740 = vmatpush1.bf16.msra.mxu0 %v1720
        %1741 = vmatprep.subr.bf16.mxu0 0
        %1742 = vmatpush1.bf16.msra.mxu0 %v1721
        %1743 = vmatprep.subr.bf16.mxu0 0
        %1744 = vmatpush1.bf16.msra.mxu0 %v1722
        %1745 = vmatprep.subr.bf16.mxu0 0
        %1746 = vmatpush1.bf16.msra.mxu0 %v1723
        %1747 = vmatprep.subr.bf16.mxu0 0
        %1748 = vmatpush1.bf16.msra.mxu0 %v1724
        %1749 = vmatprep.subr.bf16.mxu0 0
        %1750 = vmatpush1.bf16.msra.mxu0 0
        %1751 = vmatprep.subr.bf16.mxu0 0
        %1752 = vmatpush1.bf16.msra.mxu0 0
        %1753 = vmatprep.subr.bf16.mxu0 0
        %1754 = vmatpush1.bf16.msra.mxu0 0
        %1755 = vmatprep.subr.bf16.mxu0 0
        %1756 = vmatpush1.bf16.msra.mxu0 0
        %1757 = vmatprep.subr.bf16.mxu0 0
        %1758 = vmatpush1.bf16.msra.mxu0 0
        %1759 = vmatprep.subr.bf16.mxu0 0
        %1760 = vmatpush1.bf16.msra.mxu0 0
        %1761 = vmatprep.subr.bf16.mxu0 0
        %1762 = vmatpush1.bf16.msra.mxu0 0
        %1763 = vmatprep.subr.bf16.mxu0 0
        %1764 = vmatpush1.bf16.msra.mxu0 0
        %1765 = vmatprep.mubr.bf16.mxu0 0
        %1766 = vmatmul.mubr.bf16.gmra.mrb[0].mxu0 %v1653
        %v1767 = vpop.f32.mrb[0].mxu0
        %v1768 = vadd.f32 0.0, %v1767
        %v1769 = vpop.f32.mrb[0].mxu0
        %v1770 = vpop.f32.mrb[0].mxu0
        %v1771 = vadd.f32 0.0, %v1770
        %v1772 = vpop.f32.mrb[0].mxu0
        %1773 = vmatprep.mubr.bf16.mxu0 0
        %1774 = vmatmul.mubr.bf16.gmra.mrb[0].mxu0 %v1654
        %v1775 = vpop.f32.mrb[0].mxu0
        %v1776 = vadd.f32 0.0, %v1775
        %v1777 = vpop.f32.mrb[0].mxu0
        %v1778 = vpop.f32.mrb[0].mxu0
        %v1779 = vadd.f32 0.0, %v1778
        %v1780 = vpop.f32.mrb[0].mxu0
        %1781 = vmatprep.mubr.bf16.mxu0 0
        %1782 = vmatmul.mubr.bf16.gmra.mrb[0].mxu0 %v1655
        %v1783 = vpop.f32.mrb[0].mxu0
        %v1784 = vadd.f32 0.0, %v1783
        %v1785 = vpop.f32.mrb[0].mxu0
        %v1786 = vpop.f32.mrb[0].mxu0
        %v1787 = vadd.f32 0.0, %v1786
        %v1788 = vpop.f32.mrb[0].mxu0
        %1789 = vmatprep.mubr.bf16.mxu0 0
        %1790 = vmatmul.mubr.bf16.gmra.mrb[0].mxu0 %v1656
        %v1791 = vpop.f32.mrb[0].mxu0
        %v1792 = vadd.f32 0.0, %v1791
        %v1793 = vpop.f32.mrb[0].mxu0
        %v1794 = vpop.f32.mrb[0].mxu0
        %v1795 = vadd.f32 0.0, %v1794
        %v1796 = vpop.f32.mrb[0].mxu0
        %1797 = vmatprep.mubr.bf16.mxu0 0
        %1798 = vmatmul.mubr.bf16.gmra.mrb[0].mxu0 %v1657
        %v1799 = vpop.f32.mrb[0].mxu0
        %v1800 = vadd.f32 0.0, %v1799
        %v1801 = vpop.f32.mrb[0].mxu0
        %v1802 = vpop.f32.mrb[0].mxu0
        %v1803 = vadd.f32 0.0, %v1802
        %v1804 = vpop.f32.mrb[0].mxu0
        %1805 = vmatprep.mubr.bf16.mxu0 0
        %1806 = vmatmul.mubr.bf16.gmra.mrb[0].mxu0 %v1658
        %v1807 = vpop.f32.mrb[0].mxu0
        %v1808 = vadd.f32 0.0, %v1807
        %v1809 = vpop.f32.mrb[0].mxu0
        %v1810 = vpop.f32.mrb[0].mxu0
        %v1811 = vadd.f32 0.0, %v1810
        %v1812 = vpop.f32.mrb[0].mxu0
        %1813 = vmatprep.mubr.bf16.mxu0 0
        %1814 = vmatmul.mubr.bf16.gmra.mrb[0].mxu0 %v1659
        %v1815 = vpop.f32.mrb[0].mxu0
        %v1816 = vadd.f32 0.0, %v1815
        %v1817 = vpop.f32.mrb[0].mxu0
        %v1818 = vpop.f32.mrb[0].mxu0
        %v1819 = vadd.f32 0.0, %v1818
        %v1820 = vpop.f32.mrb[0].mxu0
        %1821 = vmatprep.mubr.bf16.mxu0 0
        %1822 = vmatmul.mubr.bf16.gmra.mrb[0].mxu0 %v1660
        %v1823 = vpop.f32.mrb[0].mxu0
        %v1824 = vadd.f32 0.0, %v1823
        %v1825 = vpop.f32.mrb[0].mxu0
        %v1826 = vpop.f32.mrb[0].mxu0
        %v1827 = vadd.f32 0.0, %v1826
        %v1828 = vpop.f32.mrb[0].mxu0
        %1829 = vmatprep.mubr.bf16.mxu0 0
        %1830 = vmatmul.mubr.bf16.gmra.mrb[0].mxu0 %v1661
        %v1831 = vpop.f32.mrb[0].mxu0
        %v1832 = vadd.f32 0.0, %v1831
        %v1833 = vpop.f32.mrb[0].mxu0
        %v1834 = vpop.f32.mrb[0].mxu0
        %v1835 = vadd.f32 0.0, %v1834
        %v1836 = vpop.f32.mrb[0].mxu0
        %1837 = vmatprep.mubr.bf16.mxu0 0
        %1838 = vmatmul.mubr.bf16.gmra.mrb[0].mxu0 %v1662
        %v1839 = vpop.f32.mrb[0].mxu0
        %v1840 = vadd.f32 0.0, %v1839
        %v1841 = vpop.f32.mrb[0].mxu0
        %v1842 = vpop.f32.mrb[0].mxu0
        %v1843 = vadd.f32 0.0, %v1842
        %v1844 = vpop.f32.mrb[0].mxu0
        %1845 = vmatprep.mubr.bf16.mxu0 0
        %1846 = vmatmul.mubr.bf16.gmra.mrb[0].mxu0 %v1663
        %v1847 = vpop.f32.mrb[0].mxu0
        %v1848 = vadd.f32 0.0, %v1847
        %v1849 = vpop.f32.mrb[0].mxu0
        %v1850 = vpop.f32.mrb[0].mxu0
        %v1851 = vadd.f32 0.0, %v1850
        %v1852 = vpop.f32.mrb[0].mxu0
        %1853 = vmatprep.mubr.bf16.mxu0 0
        %1854 = vmatmul.mubr.bf16.gmra.mrb[0].mxu0 %v1664
        %v1855 = vpop.f32.mrb[0].mxu0
        %v1856 = vadd.f32 0.0, %v1855
        %v1857 = vpop.f32.mrb[0].mxu0
        %v1858 = vpop.f32.mrb[0].mxu0
        %v1859 = vadd.f32 0.0, %v1858
        %v1860 = vpop.f32.mrb[0].mxu0
        %1861 = vmatprep.mubr.bf16.mxu0 0
        %1862 = vmatmul.mubr.bf16.gmra.mrb[0].mxu0 %v1665
        %v1863 = vpop.f32.mrb[0].mxu0
        %v1864 = vadd.f32 0.0, %v1863
        %v1865 = vpop.f32.mrb[0].mxu0
        %v1866 = vpop.f32.mrb[0].mxu0
        %v1867 = vadd.f32 0.0, %v1866
        %v1868 = vpop.f32.mrb[0].mxu0
        %1869 = vmatprep.mubr.bf16.mxu0 0
        %1870 = vmatmul.mubr.bf16.gmra.mrb[0].mxu0 %v1666
        %v1871 = vpop.f32.mrb[0].mxu0
        %v1872 = vadd.f32 0.0, %v1871
        %v1873 = vpop.f32.mrb[0].mxu0
        %v1874 = vpop.f32.mrb[0].mxu0
        %v1875 = vadd.f32 0.0, %v1874
        %v1876 = vpop.f32.mrb[0].mxu0
        %1877 = vmatprep.mubr.bf16.mxu0 0
        %1878 = vmatmul.mubr.bf16.gmra.mrb[0].mxu0 %v1667
        %v1879 = vpop.f32.mrb[0].mxu0
        %v1880 = vadd.f32 0.0, %v1879
        %v1881 = vpop.f32.mrb[0].mxu0
        %v1882 = vpop.f32.mrb[0].mxu0
        %v1883 = vadd.f32 0.0, %v1882
        %v1884 = vpop.f32.mrb[0].mxu0
        %1885 = vmatprep.mubr.bf16.mxu0 0
        %1886 = vmatmul.mubr.bf16.gmra.mrb[0].mxu0 %v1668
        %v1887 = vpop.f32.mrb[0].mxu0
        %v1888 = vadd.f32 0.0, %v1887
        %v1889 = vpop.f32.mrb[0].mxu0
        %v1890 = vpop.f32.mrb[0].mxu0
        %v1891 = vadd.f32 0.0, %v1890
        %v1892 = vpop.f32.mrb[0].mxu0
        %1893 = vdwg.mxu0
        %v1894 = vpack.c.bf16 %v1771, %v1768
        %v1895 = vpack.c.bf16 %v1779, %v1776
        %v1896 = vpack.c.bf16 %v1787, %v1784
        %v1897 = vpack.c.bf16 %v1795, %v1792
        %v1898 = vpack.c.bf16 %v1803, %v1800
        %v1899 = vpack.c.bf16 %v1811, %v1808
        %v1900 = vpack.c.bf16 %v1819, %v1816
        %v1901 = vpack.c.bf16 %v1827, %v1824
        %v1902 = vpack.c.bf16 %v1835, %v1832
        %v1903 = vpack.c.bf16 %v1843, %v1840
        %v1904 = vpack.c.bf16 %v1851, %v1848
        %v1905 = vpack.c.bf16 %v1859, %v1856
        %v1906 = vpack.c.bf16 %v1867, %v1864
        %v1907 = vpack.c.bf16 %v1875, %v1872
        %v1908 = vpack.c.bf16 %v1883, %v1880
        %v1909 = vpack.c.bf16 %v1891, %v1888
        %1910 = vst [vmem:[#allocation2] sm:$0xff] %v1894
        %1911 = vst [vmem:[#allocation2 + $0x8] sm:$0xff] %v1895
        %1912 = vst [vmem:[#allocation2 + $0x10] sm:$0xff] %v1896
        %1913 = vst [vmem:[#allocation2 + $0x18] sm:$0xff] %v1897
        %1914 = vst [vmem:[#allocation2 + $0x20] sm:$0xff] %v1898
        %1915 = vst [vmem:[#allocation2 + $0x28] sm:$0xff] %v1899
        %1916 = vst [vmem:[#allocation2 + $0x30] sm:$0xff] %v1900
        %1917 = vst [vmem:[#allocation2 + $0x38] sm:$0xff] %v1901
        %1918 = vst [vmem:[#allocation2 + $0x40] sm:$0xff] %v1902
        %1919 = vst [vmem:[#allocation2 + $0x48] sm:$0xff] %v1903
        %1920 = vst [vmem:[#allocation2 + $0x50] sm:$0xff] %v1904
        %1921 = vst [vmem:[#allocation2 + $0x58] sm:$0xff] %v1905
        %1922 = vst [vmem:[#allocation2 + $0x60] sm:$0xff] %v1906
        %1923 = vst [vmem:[#allocation2 + $0x68] sm:$0xff] %v1907
        %1924 = vst [vmem:[#allocation2 + $0x70] sm:$0xff] %v1908
        %1925 = vst [vmem:[#allocation2 + $0x78] sm:$0xff] %v1909
        %1958 = vrot.lane.b32.xlu0 %v1768, 1
        %v1959 = vpop.permute.xlu0 %1958
        %1960 = vrot.lane.b32.xlu0 %v1771, 1
        %v1961 = vpop.permute.xlu0 %1960
        %1962 = vrot.lane.b32.xlu0 %v1776, 1
        %v1963 = vpop.permute.xlu0 %1962
        %1964 = vrot.lane.b32.xlu0 %v1779, 1
        %v1965 = vpop.permute.xlu0 %1964
        %1966 = vrot.lane.b32.xlu0 %v1784, 1
        %v1967 = vpop.permute.xlu0 %1966
        %1968 = vrot.lane.b32.xlu0 %v1787, 1
        %v1969 = vpop.permute.xlu0 %1968
        %1970 = vrot.lane.b32.xlu0 %v1792, 1
        %v1971 = vpop.permute.xlu0 %1970
        %1972 = vrot.lane.b32.xlu0 %v1795, 1
        %v1973 = vpop.permute.xlu0 %1972
        %1974 = vrot.lane.b32.xlu0 %v1800, 1
        %v1975 = vpop.permute.xlu0 %1974
        %1976 = vrot.lane.b32.xlu0 %v1803, 1
        %v1977 = vpop.permute.xlu0 %1976
        %1978 = vrot.lane.b32.xlu0 %v1808, 1
        %v1979 = vpop.permute.xlu0 %1978
        %1980 = vrot.lane.b32.xlu0 %v1811, 1
        %v1981 = vpop.permute.xlu0 %1980
        %1982 = vrot.lane.b32.xlu0 %v1816, 1
        %v1983 = vpop.permute.xlu0 %1982
        %1984 = vrot.lane.b32.xlu0 %v1819, 1
        %v1985 = vpop.permute.xlu0 %1984
        %1986 = vrot.lane.b32.xlu0 %v1824, 1
        %v1987 = vpop.permute.xlu0 %1986
        %1988 = vrot.lane.b32.xlu0 %v1827, 1
        %v1989 = vpop.permute.xlu0 %1988
        %1990 = vrot.lane.b32.xlu0 %v1832, 1
        %v1991 = vpop.permute.xlu0 %1990
        %1992 = vrot.lane.b32.xlu0 %v1835, 1
        %v1993 = vpop.permute.xlu0 %1992
        %1994 = vrot.lane.b32.xlu0 %v1840, 1
        %v1995 = vpop.permute.xlu0 %1994
        %1996 = vrot.lane.b32.xlu0 %v1843, 1
        %v1997 = vpop.permute.xlu0 %1996
        %1998 = vrot.lane.b32.xlu0 %v1848, 1
        %v1999 = vpop.permute.xlu0 %1998
        %2000 = vrot.lane.b32.xlu0 %v1851, 1
        %v2001 = vpop.permute.xlu0 %2000
        %2002 = vrot.lane.b32.xlu0 %v1856, 1
        %v2003 = vpop.permute.xlu0 %2002
        %2004 = vrot.lane.b32.xlu0 %v1859, 1
        %v2005 = vpop.permute.xlu0 %2004
        %2006 = vrot.lane.b32.xlu0 %v1864, 1
        %v2007 = vpop.permute.xlu0 %2006
        %2008 = vrot.lane.b32.xlu0 %v1867, 1
        %v2009 = vpop.permute.xlu0 %2008
        %2010 = vrot.lane.b32.xlu0 %v1872, 1
        %v2011 = vpop.permute.xlu0 %2010
        %2012 = vrot.lane.b32.xlu0 %v1875, 1
        %v2013 = vpop.permute.xlu0 %2012
        %2014 = vrot.lane.b32.xlu0 %v1880, 1
        %v2015 = vpop.permute.xlu0 %2014
        %2016 = vrot.lane.b32.xlu0 %v1883, 1
        %v2017 = vpop.permute.xlu0 %2016
        %2018 = vrot.lane.b32.xlu0 %v1888, 1
        %v2019 = vpop.permute.xlu0 %2018
        %2020 = vrot.lane.b32.xlu0 %v1891, 1
        %v2021 = vpop.permute.xlu0 %2020
        %vm2054 = vcmask 7168
        %2055 = vst.msk [vmem:[#allocation4] sm:$0xff] %vm2054, %v1959
        %2056 = vst.msk [vmem:[#allocation4 + $0x8] sm:$0xff] %vm2054, %v1961
        %2057 = vst.msk [vmem:[#allocation4 + $0x10] sm:$0xff] %vm2054, %v1963
        %2058 = vst.msk [vmem:[#allocation4 + $0x18] sm:$0xff] %vm2054, %v1965
        %2059 = vst.msk [vmem:[#allocation4 + $0x20] sm:$0xff] %vm2054, %v1967
        %2060 = vst.msk [vmem:[#allocation4 + $0x28] sm:$0xff] %vm2054, %v1969
        %2061 = vst.msk [vmem:[#allocation4 + $0x30] sm:$0xff] %vm2054, %v1971
        %2062 = vst.msk [vmem:[#allocation4 + $0x38] sm:$0xff] %vm2054, %v1973
        %2063 = vst.msk [vmem:[#allocation4 + $0x40] sm:$0xff] %vm2054, %v1975
        %2064 = vst.msk [vmem:[#allocation4 + $0x48] sm:$0xff] %vm2054, %v1977
        %2065 = vst.msk [vmem:[#allocation4 + $0x50] sm:$0xff] %vm2054, %v1979
        %2066 = vst.msk [vmem:[#allocation4 + $0x58] sm:$0xff] %vm2054, %v1981
        %2067 = vst.msk [vmem:[#allocation4 + $0x60] sm:$0xff] %vm2054, %v1983
        %2068 = vst.msk [vmem:[#allocation4 + $0x68] sm:$0xff] %vm2054, %v1985
        %2069 = vst.msk [vmem:[#allocation4 + $0x70] sm:$0xff] %vm2054, %v1987
        %2070 = vst.msk [vmem:[#allocation4 + $0x78] sm:$0xff] %vm2054, %v1989
        %2071 = vst.msk [vmem:[#allocation4 + $0x80] sm:$0xff] %vm2054, %v1991
        %2072 = vst.msk [vmem:[#allocation4 + $0x88] sm:$0xff] %vm2054, %v1993
        %2073 = vst.msk [vmem:[#allocation4 + $0x90] sm:$0xff] %vm2054, %v1995
        %2074 = vst.msk [vmem:[#allocation4 + $0x98] sm:$0xff] %vm2054, %v1997
        %2075 = vst.msk [vmem:[#allocation4 + $0xa0] sm:$0xff] %vm2054, %v1999
        %2076 = vst.msk [vmem:[#allocation4 + $0xa8] sm:$0xff] %vm2054, %v2001
        %2077 = vst.msk [vmem:[#allocation4 + $0xb0] sm:$0xff] %vm2054, %v2003
        %2078 = vst.msk [vmem:[#allocation4 + $0xb8] sm:$0xff] %vm2054, %v2005
        %2079 = vst.msk [vmem:[#allocation4 + $0xc0] sm:$0xff] %vm2054, %v2007
        %2080 = vst.msk [vmem:[#allocation4 + $0xc8] sm:$0xff] %vm2054, %v2009
        %2081 = vst.msk [vmem:[#allocation4 + $0xd0] sm:$0xff] %vm2054, %v2011
        %2082 = vst.msk [vmem:[#allocation4 + $0xd8] sm:$0xff] %vm2054, %v2013
        %2083 = vst.msk [vmem:[#allocation4 + $0xe0] sm:$0xff] %vm2054, %v2015
        %2084 = vst.msk [vmem:[#allocation4 + $0xe8] sm:$0xff] %vm2054, %v2017
        %2085 = vst.msk [vmem:[#allocation4 + $0xf0] sm:$0xff] %vm2054, %v2019
        %2086 = vst.msk [vmem:[#allocation4 + $0xf8] sm:$0xff] %vm2054, %v2021
        %v2087 = vld [vmem:[%s5] sm:$0x1]
        %2088 = vmatprep.subr.bf16.mxu0 0
        %2089 = vmatpush1.bf16.xpose.msra.mxu0 %v1653
        %2090 = vmatprep.subr.bf16.mxu0 0
        %2091 = vmatpush1.bf16.xpose.msra.mxu0 %v1654
        %2092 = vmatprep.subr.bf16.mxu0 0
        %2093 = vmatpush1.bf16.xpose.msra.mxu0 %v1655
        %2094 = vmatprep.subr.bf16.mxu0 0
        %2095 = vmatpush1.bf16.xpose.msra.mxu0 %v1656
        %2096 = vmatprep.subr.bf16.mxu0 0
        %2097 = vmatpush1.bf16.xpose.msra.mxu0 %v1657
        %2098 = vmatprep.subr.bf16.mxu0 0
        %2099 = vmatpush1.bf16.xpose.msra.mxu0 %v1658
        %2100 = vmatprep.subr.bf16.mxu0 0
        %2101 = vmatpush1.bf16.xpose.msra.mxu0 %v1659
        %2102 = vmatprep.subr.bf16.mxu0 0
        %2103 = vmatpush1.bf16.xpose.msra.mxu0 %v1660
        %2104 = vmatprep.subr.bf16.mxu0 0
        %2105 = vmatpush1.bf16.xpose.msra.mxu0 %v1661
        %2106 = vmatprep.subr.bf16.mxu0 0
        %2107 = vmatpush1.bf16.xpose.msra.mxu0 %v1662
        %2108 = vmatprep.subr.bf16.mxu0 0
        %2109 = vmatpush1.bf16.xpose.msra.mxu0 %v1663
        %2110 = vmatprep.subr.bf16.mxu0 0
        %2111 = vmatpush1.bf16.xpose.msra.mxu0 %v1664
        %2112 = vmatprep.subr.bf16.mxu0 0
        %2113 = vmatpush1.bf16.xpose.msra.mxu0 %v1665
        %2114 = vmatprep.subr.bf16.mxu0 0
        %2115 = vmatpush1.bf16.xpose.msra.mxu0 %v1666
        %2116 = vmatprep.subr.bf16.mxu0 0
        %2117 = vmatpush1.bf16.xpose.msra.mxu0 %v1667
        %2118 = vmatprep.subr.bf16.mxu0 0
        %2119 = vmatpush1.bf16.xpose.msra.mxu0 %v1668
        %2120 = vmatprep.mubr.bf16.mxu0 0
        %2121 = vmatmul.mubr.bf16.gmra.mrb[0].mxu0 %v2087
        %v2122 = vpop.f32.mrb[0].mxu0
        %v2123 = vadd.f32 0.0, %v2122
        %v2124 = vpop.f32.mrb[0].mxu0
        %v2125 = vadd.f32 0.0, %v2124
        %v2126 = vpop.f32.mrb[0].mxu0
        %v2127 = vpop.f32.mrb[0].mxu0
        %2128 = vdwg.mxu0
        %v2131 = vcombine.low %v2123, %v2125
        %v2133 = vunpack.c.l.s4 1966171168
        %v2134 = vunpack.c.0.s8 %v2133
        %v2135 = vlaneseq
        %v2136 = vshrl.u32 %v2135, 7
        %v2137 = vsub.s32 %v2134, %v2136
        %v2138 = vrot.slane %v2131, %v2137
        %v2140 = vunpack.c.l.s4 1966171168
        %v2141 = vunpack.c.0.s8 %v2140
        %v2142 = vlaneseq
        %v2143 = vshrl.u32 %v2142, 7
        %v2144 = vsub.s32 %v2141, %v2143
        %v2145 = vrot.slane %v2138, %v2144
        %v2147 = vlaneseq
        %vm2148 = vcmp.ge.s32.totalorder %v2147, 0
        %vm2149 = vcmp.lt.s32.totalorder %v2147, 256
        %vm2150 = vmand %vm2148, %vm2149
        %2151 = vst.msk [vmem:[#allocation3] sm:$0x3] %vm2150, %v2145
      $region64: #{gat_conv_forward.1} parent=51 // pred_fallthru
        _
      // Predicated region
      $region65: #{gat_conv_forward.1} parent=51 // pred_check
        %p2152 = pneg %p1648
      $region66: #{gat_conv_forward.1} parent=51 // pred_check_branch
        %2154 = sbr.rel (%p2152) target = $region68
      $region67: #{gat_conv_forward.1} parent=51 // pred_region
        %s2155 = sshra.s32 %s305, 3
        %s2156 = sand.u32 %s305, 7
        %s2157 = smul.u32 %s2155, 2
        %s2158 = smul.addr %s2157, 4
        %s2159 = scalar_lea.vmem %s7, %s2158
        %v2160 = vld [vmem:[%s2159] sm:$0xff]
        %v2161 = vld [vmem:[%s2159 + $0x8] sm:$0xff]
        %v2162 = vld [vmem:[%s2159 + $0x10] sm:$0xff]
        %v2163 = vld [vmem:[%s2159 + $0x18] sm:$0xff]
        %v2164 = vld [vmem:[%s2159 + $0x20] sm:$0xff]
        %v2165 = vld [vmem:[%s2159 + $0x28] sm:$0xff]
        %v2166 = vld [vmem:[%s2159 + $0x30] sm:$0xff]
        %v2167 = vld [vmem:[%s2159 + $0x38] sm:$0xff]
        %v2168 = vld [vmem:[%s2159 + $0x40] sm:$0xff]
        %v2169 = vld [vmem:[%s2159 + $0x48] sm:$0xff]
        %v2170 = vld [vmem:[%s2159 + $0x50] sm:$0xff]
        %v2171 = vld [vmem:[%s2159 + $0x58] sm:$0xff]
        %v2172 = vld [vmem:[%s2159 + $0x60] sm:$0xff]
        %v2173 = vld [vmem:[%s2159 + $0x68] sm:$0xff]
        %v2174 = vld [vmem:[%s2159 + $0x70] sm:$0xff]
        %v2175 = vld [vmem:[%s2159 + $0x78] sm:$0xff]
        %s2176 = scalar_lea.vmem [#allocation4], %s305
        %v2177 = vld [vmem:[%s2176] sm:$0xff]
        %v2178 = vld [vmem:[%s2176 + $0x8] sm:$0xff]
        %v2179 = vld [vmem:[%s2176 + $0x10] sm:$0xff]
        %v2180 = vld [vmem:[%s2176 + $0x18] sm:$0xff]
        %v2181 = vld [vmem:[%s2176 + $0x20] sm:$0xff]
        %v2182 = vld [vmem:[%s2176 + $0x28] sm:$0xff]
        %v2183 = vld [vmem:[%s2176 + $0x30] sm:$0xff]
        %v2184 = vld [vmem:[%s2176 + $0x38] sm:$0xff]
        %v2185 = vld [vmem:[%s2176 + $0x40] sm:$0xff]
        %v2186 = vld [vmem:[%s2176 + $0x48] sm:$0xff]
        %v2187 = vld [vmem:[%s2176 + $0x50] sm:$0xff]
        %v2188 = vld [vmem:[%s2176 + $0x58] sm:$0xff]
        %v2189 = vld [vmem:[%s2176 + $0x60] sm:$0xff]
        %v2190 = vld [vmem:[%s2176 + $0x68] sm:$0xff]
        %v2191 = vld [vmem:[%s2176 + $0x70] sm:$0xff]
        %v2192 = vld [vmem:[%s2176 + $0x78] sm:$0xff]
        %v2193 = vld [vmem:[#allocation3] sm:$0x3]
        %2195 = vset.pattern.permute.xlu0 0
        %2196 = vperm.xlu0 %2195, %v2177
        %v2197 = vpop.permute.xlu0 %2196
        %2200 = vset.pattern.permute.xlu0 0
        %2201 = vperm.xlu0 %2200, %v2178
        %v2202 = vpop.permute.xlu0 %2201
        %2205 = vset.pattern.permute.xlu0 0
        %2206 = vperm.xlu0 %2205, %v2179
        %v2207 = vpop.permute.xlu0 %2206
        %2210 = vset.pattern.permute.xlu0 0
        %2211 = vperm.xlu0 %2210, %v2180
        %v2212 = vpop.permute.xlu0 %2211
        %2215 = vset.pattern.permute.xlu0 0
        %2216 = vperm.xlu0 %2215, %v2181
        %v2217 = vpop.permute.xlu0 %2216
        %2220 = vset.pattern.permute.xlu0 0
        %2221 = vperm.xlu0 %2220, %v2182
        %v2222 = vpop.permute.xlu0 %2221
        %2225 = vset.pattern.permute.xlu0 0
        %2226 = vperm.xlu0 %2225, %v2183
        %v2227 = vpop.permute.xlu0 %2226
        %2230 = vset.pattern.permute.xlu0 0
        %2231 = vperm.xlu0 %2230, %v2184
        %v2232 = vpop.permute.xlu0 %2231
        %2235 = vset.pattern.permute.xlu0 0
        %2236 = vperm.xlu0 %2235, %v2185
        %v2237 = vpop.permute.xlu0 %2236
        %2240 = vset.pattern.permute.xlu0 0
        %2241 = vperm.xlu0 %2240, %v2186
        %v2242 = vpop.permute.xlu0 %2241
        %2245 = vset.pattern.permute.xlu0 0
        %2246 = vperm.xlu0 %2245, %v2187
        %v2247 = vpop.permute.xlu0 %2246
        %2250 = vset.pattern.permute.xlu0 0
        %2251 = vperm.xlu0 %2250, %v2188
        %v2252 = vpop.permute.xlu0 %2251
        %2255 = vset.pattern.permute.xlu0 0
        %2256 = vperm.xlu0 %2255, %v2189
        %v2257 = vpop.permute.xlu0 %2256
        %2260 = vset.pattern.permute.xlu0 0
        %2261 = vperm.xlu0 %2260, %v2190
        %v2262 = vpop.permute.xlu0 %2261
        %2265 = vset.pattern.permute.xlu0 0
        %2266 = vperm.xlu0 %2265, %v2191
        %v2267 = vpop.permute.xlu0 %2266
        %2270 = vset.pattern.permute.xlu0 0
        %2271 = vperm.xlu0 %2270, %v2192
        %v2272 = vpop.permute.xlu0 %2271
        %v2275 = vlaneseq
        %v2276 = vshrl.u32 %v2275, 7
        %v2277 = vsub.s32 0, %v2276
        %v2278 = vrot.slane %v2193, %v2277
        %v2279 = vlaneseq
        %v2280 = vshrl.u32 %v2279, 7
        %v2281 = vsub.s32 1, %v2280
        %v2282 = vrot.slane %v2193, %v2281
        %v2285 = vadd.f32 %v2197, %v2278
        %v2286 = vadd.f32 %v2197, %v2282
        %v2287 = vadd.f32 %v2202, %v2278
        %v2288 = vadd.f32 %v2202, %v2282
        %v2289 = vadd.f32 %v2207, %v2278
        %v2290 = vadd.f32 %v2207, %v2282
        %v2291 = vadd.f32 %v2212, %v2278
        %v2292 = vadd.f32 %v2212, %v2282
        %v2293 = vadd.f32 %v2217, %v2278
        %v2294 = vadd.f32 %v2217, %v2282
        %v2295 = vadd.f32 %v2222, %v2278
        %v2296 = vadd.f32 %v2222, %v2282
        %v2297 = vadd.f32 %v2227, %v2278
        %v2298 = vadd.f32 %v2227, %v2282
        %v2299 = vadd.f32 %v2232, %v2278
        %v2300 = vadd.f32 %v2232, %v2282
        %v2301 = vadd.f32 %v2237, %v2278
        %v2302 = vadd.f32 %v2237, %v2282
        %v2303 = vadd.f32 %v2242, %v2278
        %v2304 = vadd.f32 %v2242, %v2282
        %v2305 = vadd.f32 %v2247, %v2278
        %v2306 = vadd.f32 %v2247, %v2282
        %v2307 = vadd.f32 %v2252, %v2278
        %v2308 = vadd.f32 %v2252, %v2282
        %v2309 = vadd.f32 %v2257, %v2278
        %v2310 = vadd.f32 %v2257, %v2282
        %v2311 = vadd.f32 %v2262, %v2278
        %v2312 = vadd.f32 %v2262, %v2282
        %v2313 = vadd.f32 %v2267, %v2278
        %v2314 = vadd.f32 %v2267, %v2282
        %v2315 = vadd.f32 %v2272, %v2278
        %v2316 = vadd.f32 %v2272, %v2282
        %v2317 = vmul.f32 %v2285, 0.2
        %v2318 = vmul.f32 %v2286, 0.2
        %v2319 = vmul.f32 %v2287, 0.2
        %v2320 = vmul.f32 %v2288, 0.2
        %v2321 = vmul.f32 %v2289, 0.2
        %v2322 = vmul.f32 %v2290, 0.2
        %v2323 = vmul.f32 %v2291, 0.2
        %v2324 = vmul.f32 %v2292, 0.2
        %v2325 = vmul.f32 %v2293, 0.2
        %v2326 = vmul.f32 %v2294, 0.2
        %v2327 = vmul.f32 %v2295, 0.2
        %v2328 = vmul.f32 %v2296, 0.2
        %v2329 = vmul.f32 %v2297, 0.2
        %v2330 = vmul.f32 %v2298, 0.2
        %v2331 = vmul.f32 %v2299, 0.2
        %v2332 = vmul.f32 %v2300, 0.2
        %v2333 = vmul.f32 %v2301, 0.2
        %v2334 = vmul.f32 %v2302, 0.2
        %v2335 = vmul.f32 %v2303, 0.2
        %v2336 = vmul.f32 %v2304, 0.2
        %v2337 = vmul.f32 %v2305, 0.2
        %v2338 = vmul.f32 %v2306, 0.2
        %v2339 = vmul.f32 %v2307, 0.2
        %v2340 = vmul.f32 %v2308, 0.2
        %v2341 = vmul.f32 %v2309, 0.2
        %v2342 = vmul.f32 %v2310, 0.2
        %v2343 = vmul.f32 %v2311, 0.2
        %v2344 = vmul.f32 %v2312, 0.2
        %v2345 = vmul.f32 %v2313, 0.2
        %v2346 = vmul.f32 %v2314, 0.2
        %v2347 = vmul.f32 %v2315, 0.2
        %v2348 = vmul.f32 %v2316, 0.2
        %v2349 = vmax.f32 %v2285, %v2317
        %v2350 = vmax.f32 %v2286, %v2318
        %v2351 = vmax.f32 %v2287, %v2319
        %v2352 = vmax.f32 %v2288, %v2320
        %v2353 = vmax.f32 %v2289, %v2321
        %v2354 = vmax.f32 %v2290, %v2322
        %v2355 = vmax.f32 %v2291, %v2323
        %v2356 = vmax.f32 %v2292, %v2324
        %v2357 = vmax.f32 %v2293, %v2325
        %v2358 = vmax.f32 %v2294, %v2326
        %v2359 = vmax.f32 %v2295, %v2327
        %v2360 = vmax.f32 %v2296, %v2328
        %v2361 = vmax.f32 %v2297, %v2329
        %v2362 = vmax.f32 %v2298, %v2330
        %v2363 = vmax.f32 %v2299, %v2331
        %v2364 = vmax.f32 %v2300, %v2332
        %v2365 = vmax.f32 %v2301, %v2333
        %v2366 = vmax.f32 %v2302, %v2334
        %v2367 = vmax.f32 %v2303, %v2335
        %v2368 = vmax.f32 %v2304, %v2336
        %v2369 = vmax.f32 %v2305, %v2337
        %v2370 = vmax.f32 %v2306, %v2338
        %v2371 = vmax.f32 %v2307, %v2339
        %v2372 = vmax.f32 %v2308, %v2340
        %v2373 = vmax.f32 %v2309, %v2341
        %v2374 = vmax.f32 %v2310, %v2342
        %v2375 = vmax.f32 %v2311, %v2343
        %v2376 = vmax.f32 %v2312, %v2344
        %v2377 = vmax.f32 %v2313, %v2345
        %v2378 = vmax.f32 %v2314, %v2346
        %v2379 = vmax.f32 %v2315, %v2347
        %v2380 = vmax.f32 %v2316, %v2348
        %v2381 = vunpack.c.l.bf16 %v2160
        %v2382 = vunpack.c.h.bf16 %v2160
        %v2383 = vunpack.c.l.bf16 %v2161
        %v2384 = vunpack.c.h.bf16 %v2161
        %v2385 = vunpack.c.l.bf16 %v2162
        %v2386 = vunpack.c.h.bf16 %v2162
        %v2387 = vunpack.c.l.bf16 %v2163
        %v2388 = vunpack.c.h.bf16 %v2163
        %v2389 = vunpack.c.l.bf16 %v2164
        %v2390 = vunpack.c.h.bf16 %v2164
        %v2391 = vunpack.c.l.bf16 %v2165
        %v2392 = vunpack.c.h.bf16 %v2165
        %v2393 = vunpack.c.l.bf16 %v2166
        %v2394 = vunpack.c.h.bf16 %v2166
        %v2395 = vunpack.c.l.bf16 %v2167
        %v2396 = vunpack.c.h.bf16 %v2167
        %v2397 = vunpack.c.l.bf16 %v2168
        %v2398 = vunpack.c.h.bf16 %v2168
        %v2399 = vunpack.c.l.bf16 %v2169
        %v2400 = vunpack.c.h.bf16 %v2169
        %v2401 = vunpack.c.l.bf16 %v2170
        %v2402 = vunpack.c.h.bf16 %v2170
        %v2403 = vunpack.c.l.bf16 %v2171
        %v2404 = vunpack.c.h.bf16 %v2171
        %v2405 = vunpack.c.l.bf16 %v2172
        %v2406 = vunpack.c.h.bf16 %v2172
        %v2407 = vunpack.c.l.bf16 %v2173
        %v2408 = vunpack.c.h.bf16 %v2173
        %v2409 = vunpack.c.l.bf16 %v2174
        %v2410 = vunpack.c.h.bf16 %v2174
        %v2411 = vunpack.c.l.bf16 %v2175
        %v2412 = vunpack.c.h.bf16 %v2175
        %v2413 = vadd.f32 %v2349, %v2381
        %v2414 = vadd.f32 %v2350, %v2382
        %v2415 = vadd.f32 %v2351, %v2383
        %v2416 = vadd.f32 %v2352, %v2384
        %v2417 = vadd.f32 %v2353, %v2385
        %v2418 = vadd.f32 %v2354, %v2386
        %v2419 = vadd.f32 %v2355, %v2387
        %v2420 = vadd.f32 %v2356, %v2388
        %v2421 = vadd.f32 %v2357, %v2389
        %v2422 = vadd.f32 %v2358, %v2390
        %v2423 = vadd.f32 %v2359, %v2391
        %v2424 = vadd.f32 %v2360, %v2392
        %v2425 = vadd.f32 %v2361, %v2393
        %v2426 = vadd.f32 %v2362, %v2394
        %v2427 = vadd.f32 %v2363, %v2395
        %v2428 = vadd.f32 %v2364, %v2396
        %v2429 = vadd.f32 %v2365, %v2397
        %v2430 = vadd.f32 %v2366, %v2398
        %v2431 = vadd.f32 %v2367, %v2399
        %v2432 = vadd.f32 %v2368, %v2400
        %v2433 = vadd.f32 %v2369, %v2401
        %v2434 = vadd.f32 %v2370, %v2402
        %v2435 = vadd.f32 %v2371, %v2403
        %v2436 = vadd.f32 %v2372, %v2404
        %v2437 = vadd.f32 %v2373, %v2405
        %v2438 = vadd.f32 %v2374, %v2406
        %v2439 = vadd.f32 %v2375, %v2407
        %v2440 = vadd.f32 %v2376, %v2408
        %v2441 = vadd.f32 %v2377, %v2409
        %v2442 = vadd.f32 %v2378, %v2410
        %v2443 = vadd.f32 %v2379, %v2411
        %v2444 = vadd.f32 %v2380, %v2412
        %v2445 = vmax.f32 %v2413, %v2414
        %2446 = vmax.xlane.f32.xlu0 %v2445
        %v2447 = vpop.xlane.xlu0 %2446
        %v2448 = vmax.f32 %v2415, %v2416
        %2449 = vmax.xlane.f32.xlu0 %v2448
        %v2450 = vpop.xlane.xlu0 %2449
        %v2451 = vmax.f32 %v2417, %v2418
        %2452 = vmax.xlane.f32.xlu0 %v2451
        %v2453 = vpop.xlane.xlu0 %2452
        %v2454 = vmax.f32 %v2419, %v2420
        %2455 = vmax.xlane.f32.xlu0 %v2454
        %v2456 = vpop.xlane.xlu0 %2455
        %v2457 = vmax.f32 %v2421, %v2422
        %2458 = vmax.xlane.f32.xlu0 %v2457
        %v2459 = vpop.xlane.xlu0 %2458
        %v2460 = vmax.f32 %v2423, %v2424
        %2461 = vmax.xlane.f32.xlu0 %v2460
        %v2462 = vpop.xlane.xlu0 %2461
        %v2463 = vmax.f32 %v2425, %v2426
        %2464 = vmax.xlane.f32.xlu0 %v2463
        %v2465 = vpop.xlane.xlu0 %2464
        %v2466 = vmax.f32 %v2427, %v2428
        %2467 = vmax.xlane.f32.xlu0 %v2466
        %v2468 = vpop.xlane.xlu0 %2467
        %v2469 = vmax.f32 %v2429, %v2430
        %2470 = vmax.xlane.f32.xlu0 %v2469
        %v2471 = vpop.xlane.xlu0 %2470
        %v2472 = vmax.f32 %v2431, %v2432
        %2473 = vmax.xlane.f32.xlu0 %v2472
        %v2474 = vpop.xlane.xlu0 %2473
        %v2475 = vmax.f32 %v2433, %v2434
        %2476 = vmax.xlane.f32.xlu0 %v2475
        %v2477 = vpop.xlane.xlu0 %2476
        %v2478 = vmax.f32 %v2435, %v2436
        %2479 = vmax.xlane.f32.xlu0 %v2478
        %v2480 = vpop.xlane.xlu0 %2479
        %v2481 = vmax.f32 %v2437, %v2438
        %2482 = vmax.xlane.f32.xlu0 %v2481
        %v2483 = vpop.xlane.xlu0 %2482
        %v2484 = vmax.f32 %v2439, %v2440
        %2485 = vmax.xlane.f32.xlu0 %v2484
        %v2486 = vpop.xlane.xlu0 %2485
        %v2487 = vmax.f32 %v2441, %v2442
        %2488 = vmax.xlane.f32.xlu0 %v2487
        %v2489 = vpop.xlane.xlu0 %2488
        %v2490 = vmax.f32 %v2443, %v2444
        %2491 = vmax.xlane.f32.xlu0 %v2490
        %v2492 = vpop.xlane.xlu0 %2491
        %v2493 = vmax.f32 %v2447, -1e+20
        %v2494 = vmax.f32 %v2450, -1e+20
        %v2495 = vmax.f32 %v2453, -1e+20
        %v2496 = vmax.f32 %v2456, -1e+20
        %v2497 = vmax.f32 %v2459, -1e+20
        %v2498 = vmax.f32 %v2462, -1e+20
        %v2499 = vmax.f32 %v2465, -1e+20
        %v2500 = vmax.f32 %v2468, -1e+20
        %v2501 = vmax.f32 %v2471, -1e+20
        %v2502 = vmax.f32 %v2474, -1e+20
        %v2503 = vmax.f32 %v2477, -1e+20
        %v2504 = vmax.f32 %v2480, -1e+20
        %v2505 = vmax.f32 %v2483, -1e+20
        %v2506 = vmax.f32 %v2486, -1e+20
        %v2507 = vmax.f32 %v2489, -1e+20
        %v2508 = vmax.f32 %v2492, -1e+20
        %v2509 = vsub.f32 %v2413, %v2493
        %v2510 = vsub.f32 %v2414, %v2493
        %v2511 = vsub.f32 %v2415, %v2494
        %v2512 = vsub.f32 %v2416, %v2494
        %v2513 = vsub.f32 %v2417, %v2495
        %v2514 = vsub.f32 %v2418, %v2495
        %v2515 = vsub.f32 %v2419, %v2496
        %v2516 = vsub.f32 %v2420, %v2496
        %v2517 = vsub.f32 %v2421, %v2497
        %v2518 = vsub.f32 %v2422, %v2497
        %v2519 = vsub.f32 %v2423, %v2498
        %v2520 = vsub.f32 %v2424, %v2498
        %v2521 = vsub.f32 %v2425, %v2499
        %v2522 = vsub.f32 %v2426, %v2499
        %v2523 = vsub.f32 %v2427, %v2500
        %v2524 = vsub.f32 %v2428, %v2500
        %v2525 = vsub.f32 %v2429, %v2501
        %v2526 = vsub.f32 %v2430, %v2501
        %v2527 = vsub.f32 %v2431, %v2502
        %v2528 = vsub.f32 %v2432, %v2502
        %v2529 = vsub.f32 %v2433, %v2503
        %v2530 = vsub.f32 %v2434, %v2503
        %v2531 = vsub.f32 %v2435, %v2504
        %v2532 = vsub.f32 %v2436, %v2504
        %v2533 = vsub.f32 %v2437, %v2505
        %v2534 = vsub.f32 %v2438, %v2505
        %v2535 = vsub.f32 %v2439, %v2506
        %v2536 = vsub.f32 %v2440, %v2506
        %v2537 = vsub.f32 %v2441, %v2507
        %v2538 = vsub.f32 %v2442, %v2507
        %v2539 = vsub.f32 %v2443, %v2508
        %v2540 = vsub.f32 %v2444, %v2508
        %v2541 = vmul.f32 %v2509, 1.442695
        %v2542 = vpow.pop %v2541
        %v2543 = vmul.f32 %v2510, 1.442695
        %v2544 = vpow.pop %v2543
        %v2545 = vmul.f32 %v2511, 1.442695
        %v2546 = vpow.pop %v2545
        %v2547 = vmul.f32 %v2512, 1.442695
        %v2548 = vpow.pop %v2547
        %v2549 = vmul.f32 %v2513, 1.442695
        %v2550 = vpow.pop %v2549
        %v2551 = vmul.f32 %v2514, 1.442695
        %v2552 = vpow.pop %v2551
        %v2553 = vmul.f32 %v2515, 1.442695
        %v2554 = vpow.pop %v2553
        %v2555 = vmul.f32 %v2516, 1.442695
        %v2556 = vpow.pop %v2555
        %v2557 = vmul.f32 %v2517, 1.442695
        %v2558 = vpow.pop %v2557
        %v2559 = vmul.f32 %v2518, 1.442695
        %v2560 = vpow.pop %v2559
        %v2561 = vmul.f32 %v2519, 1.442695
        %v2562 = vpow.pop %v2561
        %v2563 = vmul.f32 %v2520, 1.442695
        %v2564 = vpow.pop %v2563
        %v2565 = vmul.f32 %v2521, 1.442695
        %v2566 = vpow.pop %v2565
        %v2567 = vmul.f32 %v2522, 1.442695
        %v2568 = vpow.pop %v2567
        %v2569 = vmul.f32 %v2523, 1.442695
        %v2570 = vpow.pop %v2569
        %v2571 = vmul.f32 %v2524, 1.442695
        %v2572 = vpow.pop %v2571
        %v2573 = vmul.f32 %v2525, 1.442695
        %v2574 = vpow.pop %v2573
        %v2575 = vmul.f32 %v2526, 1.442695
        %v2576 = vpow.pop %v2575
        %v2577 = vmul.f32 %v2527, 1.442695
        %v2578 = vpow.pop %v2577
        %v2579 = vmul.f32 %v2528, 1.442695
        %v2580 = vpow.pop %v2579
        %v2581 = vmul.f32 %v2529, 1.442695
        %v2582 = vpow.pop %v2581
        %v2583 = vmul.f32 %v2530, 1.442695
        %v2584 = vpow.pop %v2583
        %v2585 = vmul.f32 %v2531, 1.442695
        %v2586 = vpow.pop %v2585
        %v2587 = vmul.f32 %v2532, 1.442695
        %v2588 = vpow.pop %v2587
        %v2589 = vmul.f32 %v2533, 1.442695
        %v2590 = vpow.pop %v2589
        %v2591 = vmul.f32 %v2534, 1.442695
        %v2592 = vpow.pop %v2591
        %v2593 = vmul.f32 %v2535, 1.442695
        %v2594 = vpow.pop %v2593
        %v2595 = vmul.f32 %v2536, 1.442695
        %v2596 = vpow.pop %v2595
        %v2597 = vmul.f32 %v2537, 1.442695
        %v2598 = vpow.pop %v2597
        %v2599 = vmul.f32 %v2538, 1.442695
        %v2600 = vpow.pop %v2599
        %v2601 = vmul.f32 %v2539, 1.442695
        %v2602 = vpow.pop %v2601
        %v2603 = vmul.f32 %v2540, 1.442695
        %v2604 = vpow.pop %v2603
        %v2605 = vadd.f32 %v2542, %v2544
        %2606 = vadd.xlane.f32.xlu0 %v2605
        %v2607 = vpop.xlane.xlu0 %2606
        %v2608 = vadd.f32 %v2546, %v2548
        %2609 = vadd.xlane.f32.xlu0 %v2608
        %v2610 = vpop.xlane.xlu0 %2609
        %v2611 = vadd.f32 %v2550, %v2552
        %2612 = vadd.xlane.f32.xlu0 %v2611
        %v2613 = vpop.xlane.xlu0 %2612
        %v2614 = vadd.f32 %v2554, %v2556
        %2615 = vadd.xlane.f32.xlu0 %v2614
        %v2616 = vpop.xlane.xlu0 %2615
        %v2617 = vadd.f32 %v2558, %v2560
        %2618 = vadd.xlane.f32.xlu0 %v2617
        %v2619 = vpop.xlane.xlu0 %2618
        %v2620 = vadd.f32 %v2562, %v2564
        %2621 = vadd.xlane.f32.xlu0 %v2620
        %v2622 = vpop.xlane.xlu0 %2621
        %v2623 = vadd.f32 %v2566, %v2568
        %2624 = vadd.xlane.f32.xlu0 %v2623
        %v2625 = vpop.xlane.xlu0 %2624
        %v2626 = vadd.f32 %v2570, %v2572
        %2627 = vadd.xlane.f32.xlu0 %v2626
        %v2628 = vpop.xlane.xlu0 %2627
        %v2629 = vadd.f32 %v2574, %v2576
        %2630 = vadd.xlane.f32.xlu0 %v2629
        %v2631 = vpop.xlane.xlu0 %2630
        %v2632 = vadd.f32 %v2578, %v2580
        %2633 = vadd.xlane.f32.xlu0 %v2632
        %v2634 = vpop.xlane.xlu0 %2633
        %v2635 = vadd.f32 %v2582, %v2584
        %2636 = vadd.xlane.f32.xlu0 %v2635
        %v2637 = vpop.xlane.xlu0 %2636
        %v2638 = vadd.f32 %v2586, %v2588
        %2639 = vadd.xlane.f32.xlu0 %v2638
        %v2640 = vpop.xlane.xlu0 %2639
        %v2641 = vadd.f32 %v2590, %v2592
        %2642 = vadd.xlane.f32.xlu0 %v2641
        %v2643 = vpop.xlane.xlu0 %2642
        %v2644 = vadd.f32 %v2594, %v2596
        %2645 = vadd.xlane.f32.xlu0 %v2644
        %v2646 = vpop.xlane.xlu0 %2645
        %v2647 = vadd.f32 %v2598, %v2600
        %2648 = vadd.xlane.f32.xlu0 %v2647
        %v2649 = vpop.xlane.xlu0 %2648
        %v2650 = vadd.f32 %v2602, %v2604
        %2651 = vadd.xlane.f32.xlu0 %v2650
        %v2652 = vpop.xlane.xlu0 %2651
        %v2653 = vmax.f32 %v2607, 1e-16
        %v2654 = vmax.f32 %v2610, 1e-16
        %v2655 = vmax.f32 %v2613, 1e-16
        %v2656 = vmax.f32 %v2616, 1e-16
        %v2657 = vmax.f32 %v2619, 1e-16
        %v2658 = vmax.f32 %v2622, 1e-16
        %v2659 = vmax.f32 %v2625, 1e-16
        %v2660 = vmax.f32 %v2628, 1e-16
        %v2661 = vmax.f32 %v2631, 1e-16
        %v2662 = vmax.f32 %v2634, 1e-16
        %v2663 = vmax.f32 %v2637, 1e-16
        %v2664 = vmax.f32 %v2640, 1e-16
        %v2665 = vmax.f32 %v2643, 1e-16
        %v2666 = vmax.f32 %v2646, 1e-16
        %v2667 = vmax.f32 %v2649, 1e-16
        %v2668 = vmax.f32 %v2652, 1e-16
        %v2669 = vrcp.pop %v2653
        %v2670 = vrcp.pop %v2654
        %v2671 = vrcp.pop %v2655
        %v2672 = vrcp.pop %v2656
        %v2673 = vrcp.pop %v2657
        %v2674 = vrcp.pop %v2658
        %v2675 = vrcp.pop %v2659
        %v2676 = vrcp.pop %v2660
        %v2677 = vrcp.pop %v2661
        %v2678 = vrcp.pop %v2662
        %v2679 = vrcp.pop %v2663
        %v2680 = vrcp.pop %v2664
        %v2681 = vrcp.pop %v2665
        %v2682 = vrcp.pop %v2666
        %v2683 = vrcp.pop %v2667
        %v2684 = vrcp.pop %v2668
        %v2685 = vpack.c.bf16 %v2546, %v2542
        %v2686 = vpack.c.bf16 %v2548, %v2544
        %v2687 = vpack.c.bf16 %v2554, %v2550
        %v2688 = vpack.c.bf16 %v2556, %v2552
        %v2689 = vpack.c.bf16 %v2562, %v2558
        %v2690 = vpack.c.bf16 %v2564, %v2560
        %v2691 = vpack.c.bf16 %v2570, %v2566
        %v2692 = vpack.c.bf16 %v2572, %v2568
        %v2693 = vpack.c.bf16 %v2578, %v2574
        %v2694 = vpack.c.bf16 %v2580, %v2576
        %v2695 = vpack.c.bf16 %v2586, %v2582
        %v2696 = vpack.c.bf16 %v2588, %v2584
        %v2697 = vpack.c.bf16 %v2594, %v2590
        %v2698 = vpack.c.bf16 %v2596, %v2592
        %v2699 = vpack.c.bf16 %v2602, %v2598
        %v2700 = vpack.c.bf16 %v2604, %v2600
        %v2701 = vld [vmem:[#allocation2] sm:$0xff]
        %v2702 = vld [vmem:[#allocation2 + $0x8] sm:$0xff]
        %v2703 = vld [vmem:[#allocation2 + $0x10] sm:$0xff]
        %v2704 = vld [vmem:[#allocation2 + $0x18] sm:$0xff]
        %v2705 = vld [vmem:[#allocation2 + $0x20] sm:$0xff]
        %v2706 = vld [vmem:[#allocation2 + $0x28] sm:$0xff]
        %v2707 = vld [vmem:[#allocation2 + $0x30] sm:$0xff]
        %v2708 = vld [vmem:[#allocation2 + $0x38] sm:$0xff]
        %v2709 = vld [vmem:[#allocation2 + $0x40] sm:$0xff]
        %v2710 = vld [vmem:[#allocation2 + $0x48] sm:$0xff]
        %v2711 = vld [vmem:[#allocation2 + $0x50] sm:$0xff]
        %v2712 = vld [vmem:[#allocation2 + $0x58] sm:$0xff]
        %v2713 = vld [vmem:[#allocation2 + $0x60] sm:$0xff]
        %v2714 = vld [vmem:[#allocation2 + $0x68] sm:$0xff]
        %v2715 = vld [vmem:[#allocation2 + $0x70] sm:$0xff]
        %v2716 = vld [vmem:[#allocation2 + $0x78] sm:$0xff]
        %2717 = vmatprep.subr.bf16.mxu0 0
        %2718 = vmatpush1.bf16.msra.mxu0 %v2701
        %2719 = vmatprep.subr.bf16.mxu0 0
        %2720 = vmatpush1.bf16.msra.mxu0 %v2702
        %2721 = vmatprep.subr.bf16.mxu0 0
        %2722 = vmatpush1.bf16.msra.mxu0 %v2703
        %2723 = vmatprep.subr.bf16.mxu0 0
        %2724 = vmatpush1.bf16.msra.mxu0 %v2704
        %2725 = vmatprep.subr.bf16.mxu0 0
        %2726 = vmatpush1.bf16.msra.mxu0 %v2705
        %2727 = vmatprep.subr.bf16.mxu0 0
        %2728 = vmatpush1.bf16.msra.mxu0 %v2706
        %2729 = vmatprep.subr.bf16.mxu0 0
        %2730 = vmatpush1.bf16.msra.mxu0 %v2707
        %2731 = vmatprep.subr.bf16.mxu0 0
        %2732 = vmatpush1.bf16.msra.mxu0 %v2708
        %2733 = vmatprep.subr.bf16.mxu0 0
        %2734 = vmatpush1.bf16.msra.mxu0 %v2709
        %2735 = vmatprep.subr.bf16.mxu0 0
        %2736 = vmatpush1.bf16.msra.mxu0 %v2710
        %2737 = vmatprep.subr.bf16.mxu0 0
        %2738 = vmatpush1.bf16.msra.mxu0 %v2711
        %2739 = vmatprep.subr.bf16.mxu0 0
        %2740 = vmatpush1.bf16.msra.mxu0 %v2712
        %2741 = vmatprep.subr.bf16.mxu0 0
        %2742 = vmatpush1.bf16.msra.mxu0 %v2713
        %2743 = vmatprep.subr.bf16.mxu0 0
        %2744 = vmatpush1.bf16.msra.mxu0 %v2714
        %2745 = vmatprep.subr.bf16.mxu0 0
        %2746 = vmatpush1.bf16.msra.mxu0 %v2715
        %2747 = vmatprep.subr.bf16.mxu0 0
        %2748 = vmatpush1.bf16.msra.mxu0 %v2716
        %2749 = vmatprep.mubr.bf16.mxu0 %v2686
        %2750 = vmatmul.mubr.bf16.gmra.mrb[0].mxu0 %v2685
        %v2751 = vpop.f32.mrb[0].mxu0
        %v2752 = vadd.f32 0.0, %v2751
        %v2753 = vpop.f32.mrb[0].mxu0
        %v2754 = vpop.f32.mrb[0].mxu0
        %v2755 = vadd.f32 0.0, %v2754
        %v2756 = vpop.f32.mrb[0].mxu0
        %2757 = vmatprep.mubr.bf16.mxu0 %v2688
        %2758 = vmatmul.mubr.bf16.gmra.mrb[0].mxu0 %v2687
        %v2759 = vpop.f32.mrb[0].mxu0
        %v2760 = vadd.f32 0.0, %v2759
        %v2761 = vpop.f32.mrb[0].mxu0
        %v2762 = vpop.f32.mrb[0].mxu0
        %v2763 = vadd.f32 0.0, %v2762
        %v2764 = vpop.f32.mrb[0].mxu0
        %2765 = vmatprep.mubr.bf16.mxu0 %v2690
        %2766 = vmatmul.mubr.bf16.gmra.mrb[0].mxu0 %v2689
        %v2767 = vpop.f32.mrb[0].mxu0
        %v2768 = vadd.f32 0.0, %v2767
        %v2769 = vpop.f32.mrb[0].mxu0
        %v2770 = vpop.f32.mrb[0].mxu0
        %v2771 = vadd.f32 0.0, %v2770
        %v2772 = vpop.f32.mrb[0].mxu0
        %2773 = vmatprep.mubr.bf16.mxu0 %v2692
        %2774 = vmatmul.mubr.bf16.gmra.mrb[0].mxu0 %v2691
        %v2775 = vpop.f32.mrb[0].mxu0
        %v2776 = vadd.f32 0.0, %v2775
        %v2777 = vpop.f32.mrb[0].mxu0
        %v2778 = vpop.f32.mrb[0].mxu0
        %v2779 = vadd.f32 0.0, %v2778
        %v2780 = vpop.f32.mrb[0].mxu0
        %2781 = vmatprep.mubr.bf16.mxu0 %v2694
        %2782 = vmatmul.mubr.bf16.gmra.mrb[0].mxu0 %v2693
        %v2783 = vpop.f32.mrb[0].mxu0
        %v2784 = vadd.f32 0.0, %v2783
        %v2785 = vpop.f32.mrb[0].mxu0
        %v2786 = vpop.f32.mrb[0].mxu0
        %v2787 = vadd.f32 0.0, %v2786
        %v2788 = vpop.f32.mrb[0].mxu0
        %2789 = vmatprep.mubr.bf16.mxu0 %v2696
        %2790 = vmatmul.mubr.bf16.gmra.mrb[0].mxu0 %v2695
        %v2791 = vpop.f32.mrb[0].mxu0
        %v2792 = vadd.f32 0.0, %v2791
        %v2793 = vpop.f32.mrb[0].mxu0
        %v2794 = vpop.f32.mrb[0].mxu0
        %v2795 = vadd.f32 0.0, %v2794
        %v2796 = vpop.f32.mrb[0].mxu0
        %2797 = vmatprep.mubr.bf16.mxu0 %v2698
        %2798 = vmatmul.mubr.bf16.gmra.mrb[0].mxu0 %v2697
        %v2799 = vpop.f32.mrb[0].mxu0
        %v2800 = vadd.f32 0.0, %v2799
        %v2801 = vpop.f32.mrb[0].mxu0
        %v2802 = vpop.f32.mrb[0].mxu0
        %v2803 = vadd.f32 0.0, %v2802
        %v2804 = vpop.f32.mrb[0].mxu0
        %2805 = vmatprep.mubr.bf16.mxu0 %v2700
        %2806 = vmatmul.mubr.bf16.gmra.mrb[0].mxu0 %v2699
        %v2807 = vpop.f32.mrb[0].mxu0
        %v2808 = vadd.f32 0.0, %v2807
        %v2809 = vpop.f32.mrb[0].mxu0
        %v2810 = vpop.f32.mrb[0].mxu0
        %v2811 = vadd.f32 0.0, %v2810
        %v2812 = vpop.f32.mrb[0].mxu0
        %2813 = vdwg.mxu0
        %v2814 = vmul.f32 %v2752, %v2669
        %v2815 = vmul.f32 %v2755, %v2670
        %v2816 = vmul.f32 %v2760, %v2671
        %v2817 = vmul.f32 %v2763, %v2672
        %v2818 = vmul.f32 %v2768, %v2673
        %v2819 = vmul.f32 %v2771, %v2674
        %v2820 = vmul.f32 %v2776, %v2675
        %v2821 = vmul.f32 %v2779, %v2676
        %v2822 = vmul.f32 %v2784, %v2677
        %v2823 = vmul.f32 %v2787, %v2678
        %v2824 = vmul.f32 %v2792, %v2679
        %v2825 = vmul.f32 %v2795, %v2680
        %v2826 = vmul.f32 %v2800, %v2681
        %v2827 = vmul.f32 %v2803, %v2682
        %v2828 = vmul.f32 %v2808, %v2683
        %v2829 = vmul.f32 %v2811, %v2684
        %v2830 = vld [vmem:[%s6] sm:$0x1]
        %v2832 = vlaneseq
        %v2833 = vshrl.u32 %v2832, 7
        %v2834 = vsub.s32 0, %v2833
        %v2835 = vrot.slane %v2830, %v2834
        %v2837 = vadd.f32 %v2814, %v2835
        %v2838 = vadd.f32 %v2815, %v2835
        %v2839 = vadd.f32 %v2816, %v2835
        %v2840 = vadd.f32 %v2817, %v2835
        %v2841 = vadd.f32 %v2818, %v2835
        %v2842 = vadd.f32 %v2819, %v2835
        %v2843 = vadd.f32 %v2820, %v2835
        %v2844 = vadd.f32 %v2821, %v2835
        %v2845 = vadd.f32 %v2822, %v2835
        %v2846 = vadd.f32 %v2823, %v2835
        %v2847 = vadd.f32 %v2824, %v2835
        %v2848 = vadd.f32 %v2825, %v2835
        %v2849 = vadd.f32 %v2826, %v2835
        %v2850 = vadd.f32 %v2827, %v2835
        %v2851 = vadd.f32 %v2828, %v2835
        %v2852 = vadd.f32 %v2829, %v2835
        %2853 = vst [vmem:[%s301] sm:$0xff] %v2837
        %2854 = vst [vmem:[%s301 + $0x8] sm:$0xff] %v2838
        %2855 = vst [vmem:[%s301 + $0x10] sm:$0xff] %v2839
        %2856 = vst [vmem:[%s301 + $0x18] sm:$0xff] %v2840
        %2857 = vst [vmem:[%s301 + $0x20] sm:$0xff] %v2841
        %2858 = vst [vmem:[%s301 + $0x28] sm:$0xff] %v2842
        %2859 = vst [vmem:[%s301 + $0x30] sm:$0xff] %v2843
        %2860 = vst [vmem:[%s301 + $0x38] sm:$0xff] %v2844
        %2861 = vst [vmem:[%s301 + $0x40] sm:$0xff] %v2845
        %2862 = vst [vmem:[%s301 + $0x48] sm:$0xff] %v2846
        %2863 = vst [vmem:[%s301 + $0x50] sm:$0xff] %v2847
        %2864 = vst [vmem:[%s301 + $0x58] sm:$0xff] %v2848
        %2865 = vst [vmem:[%s301 + $0x60] sm:$0xff] %v2849
        %2866 = vst [vmem:[%s301 + $0x68] sm:$0xff] %v2850
        %2867 = vst [vmem:[%s301 + $0x70] sm:$0xff] %v2851
        %2868 = vst [vmem:[%s301 + $0x78] sm:$0xff] %v2852
      $region68: #{gat_conv_forward.1} parent=51 // pred_fallthru
        _
      %s2869 = smul.u32 %s23, %s24
      %s2870 = smul.u32 16, %s2869
      %p2871 = scmp.lt.s32.totalorder %s2870, 31
      %s2872 = scalar_select %p2871, %s2870, 31
      %s2873 = smul.addr %s2872, 8
      %s2874 = scalar_lea.vmem %s8, %s2873
      // Predicated region
      $region69: #{gat_conv_forward.1} parent=51 // pred_check
        %p2875 = pneg %p219
      $region70: #{gat_conv_forward.1} parent=51 // pred_check_branch
        %2877 = sbr.rel (%p2875) target = $region72
      $region71: #{gat_conv_forward.1} parent=51 // pred_region
        %s2878 = smul.u32 %s23, %s24
        %s2879 = smul.u32 16, %s2878
      $region72: #{gat_conv_forward.1} parent=51 // pred_fallthru
        _
    $region52: #{gat_conv_forward.1} parent=5 // pred_fallthru
      _
    %p2880 = scmp.le.s32.totalorder 2, %s14
    // Predicated region
    $region73: #{gat_conv_forward.1} parent=5 // pred_check
      %p2881 = pneg %p2880
    $region74: #{gat_conv_forward.1} parent=5 // pred_check_branch
      %2883 = sbr.rel (%p2881) target = $region76
    $region75: #{gat_conv_forward.1} parent=5 // pred_region
      %s2884 = ssub.s32 %s14, 2
      // Predicated region
      $region77: #{gat_conv_forward.1} parent=75 // pred_check
        %p2885 = pneg %p225
      $region78: #{gat_conv_forward.1} parent=75 // pred_check_branch
        %2887 = sbr.rel (%p2885) target = $region80
      $region79: #{gat_conv_forward.1} parent=75 // pred_region
        %s2888 = smul.u32 %s25, %s26
        %s2889 = smul.u32 16, %s2888
        %p2890 = scmp.lt.s32.totalorder %s2889, 31
        %s2891 = scalar_select %p2890, %s2889, 31
        %s2892 = smul.addr %s2891, 8
        %s2893 = scalar_lea.vmem %s8, %s2892
      $region80: #{gat_conv_forward.1} parent=75 // pred_fallthru
        _
    $region76: #{gat_conv_forward.1} parent=5 // pred_fallthru
      _
  $region6: #{gat_conv_forward.1} parent=0 // loop_footer
    %s18 = sadd.s32 1, %s14
  $region7: #{gat_conv_forward.1} parent=0 // loop_footer_branch
    %13 = sbr.rel target = $region3
  $region8: #{gat_conv_forward.1} parent=0 // loop_exit
    _

</llo_original>
